<compile_context>
chip_gen: v7x
topology: tpu7x:2x2x1
jax: 0.10.0
libtpu: 0.0.40
codegen_flags: <defaults>
</compile_context>

<pallas_src>
import math

import jax
import jax.numpy as jnp
from jax.experimental import pallas as pl
from jax.experimental.pallas import tpu as pltpu


def _bilstm_kernel(x_ref,    # (T*8, IP)       time-major, batch padded to 8, ones col appended
                   wb_ref,   # (2*IP+128, 512) rows [Wx_fwd+b ; Wx_bwd+b ; Wh_fwd (row-padded)]
                   wo_ref,   # (257, O)        rows [W_lin_fwd(pad) ; W_lin_bwd(pad) ; b_lin]
                   out_ref): # (8, O)
    BP = 8                                   # padded batch (one sublane tile)
    GP = 128                                 # padded per-gate width (one lane tile); data in [:64]
    T = x_ref.shape[0] // BP
    IP = x_ref.shape[1]                      # padded input width (features + ones column)
    G2, G3 = 2 * GP, 3 * GP

    x = x_ref[...]
    wx_f = wb_ref[0:IP, :]                   # (IP, 4*GP)  forward input proj + bias row
    wx_b = wb_ref[IP:2 * IP, :]              # (IP, 4*GP)  backward input proj + bias row
    wh = wb_ref[2 * IP:2 * IP + GP, :]       # (GP, 4*GP)  forward recurrent weights (rows 64: zero)

    def sig(v):  # sigmoid via a single EUP tanh (identity: sigmoid(x) = 0.5*tanh(x/2)+0.5)
        return 0.5 * jnp.tanh(0.5 * v) + 0.5

    # Hoisted input projection for the forward direction (all T steps), bias folded in.
    xp = jnp.dot(x, wx_f, preferred_element_type=jnp.float32)                 # (T*8, 4*GP)

    h = jnp.zeros((BP, GP), jnp.float32)
    c = jnp.zeros((BP, GP), jnp.float32)

    # Fully unrolled forward recurrence (T static): per step one (8,GP)x(GP,4GP) MXU matmul,
    # then whole-vreg gate math (gates at lane offsets 0/128/256/384 -> no cross-lane rolls).
    # Padded lanes stay exactly zero in h and c (weights/bias are zero there).
    for t in range(T):
        gates = xp[t * BP:(t + 1) * BP, :] + jnp.dot(
            h, wh, preferred_element_type=jnp.float32)                        # (8, 4*GP)
        s = sig(gates[:, :G3])               # [i | f | o], three whole vregs, one EUP pass
        g = jnp.tanh(gates[:, G3:])          # cell gate, one whole vreg
        c = s[:, GP:G2] * c + s[:, :GP] * g
        h = s[:, G2:G3] * jnp.tanh(c)

    # Backward direction at original position T-1: one step from zero state
    # (f*c0 == 0 and h0 @ Wh_bwd == 0, so only the last-timestep input projection matters).
    gb = jnp.dot(x[(T - 1) * BP:, :], wx_b, preferred_element_type=jnp.float32)  # (8, 4*GP)
    c_b = sig(gb[:, :GP]) * jnp.tanh(gb[:, G3:])          # i * g
    h_b = sig(gb[:, G2:G3]) * jnp.tanh(c_b)               # o * tanh(c)

    # Epilogue: no lane-axis concat — two small dots accumulate directly, then the bias row.
    out_ref[...] = (jnp.dot(h, wo_ref[0:GP, :], preferred_element_type=jnp.float32)
                    + jnp.dot(h_b, wo_ref[GP:G2, :], preferred_element_type=jnp.float32)
                    + wo_ref[G2:G2 + 1, :])               # (1, O) broadcasts over the 8 rows


@jax.jit
def lstm_model_forward(x_btI, kparams):
    """x_btI: (B, T, I) float32, batch_first like PyTorch. Returns (B, O) float32."""
    B, T, I = x_btI.shape
    O = kparams["w_out"].shape[1]
    BP = 8
    assert B <= BP, "batch > 8 needs a batch-chunk grid axis (dimension_semantics=('parallel',))"

    # Time-major, batch zero-padded to the (8,128) sublane tile, ones column appended so the
    # LSTM bias rides the same MXU matmul as the input projection; feature axis padded to 8.
    feat = I + 1
    pad_f = (-feat) % 8
    x_tbi = jnp.transpose(x_btI.astype(jnp.float32), (1, 0, 2))               # (T, B, I)
    x_tbi = jnp.pad(x_tbi, ((0, 0), (0, BP - B), (0, 0)))                     # (T, 8, I)
    x_tbi = jnp.concatenate(
        [x_tbi, jnp.ones((T, BP, 1), jnp.float32),
         jnp.zeros((T, BP, pad_f), jnp.float32)], axis=2)                     # (T, 8, IP)
    x_flat = x_tbi.reshape(T * BP, feat + pad_f)

    out = pl.pallas_call(
        _bilstm_kernel,
        out_shape=jax.ShapeDtypeStruct((BP, O), jnp.float32),
        # Tiny problem (<1 MiB total): all operands live whole in VMEM; no grid needed.
        in_specs=[pl.BlockSpec(memory_space=pltpu.MemorySpace.VMEM)] * 3,
        out_specs=pl.BlockSpec(memory_space=pltpu.MemorySpace.VMEM),
    )(x_flat, kparams["w_big"], kparams["w_out"])
    return out[:B]


def init_raw_params(key, input_size=7, hidden=64, output_size=3):
    """PyTorch-convention params: LSTM uniform(-1/sqrt(H), 1/sqrt(H)), Linear
    uniform(-1/sqrt(fan_in), ...). LSTM gate row order is PyTorch's [i, f, g, o]."""
    bound = 1.0 / math.sqrt(hidden)
    lin_bound = 1.0 / math.sqrt(2 * hidden)
    ks = jax.random.split(key, 10)
    u = lambda k, shape, b: jax.random.uniform(k, shape, jnp.float32, -b, b)
    return {
        "w_ih_f": u(ks[0], (4 * hidden, input_size), bound),
        "w_hh_f": u(ks[1], (4 * hidden, hidden), bound),
        "b_ih_f": u(ks[2], (4 * hidden,), bound),
        "b_hh_f": u(ks[3], (4 * hidden,), bound),
        "w_ih_b": u(ks[4], (4 * hidden, input_size), bound),
        "w_hh_b": u(ks[5], (4 * hidden, hidden), bound),
        "b_ih_b": u(ks[6], (4 * hidden,), bound),
        "b_hh_b": u(ks[7], (4 * hidden,), bound),
        "w_lin": u(ks[8], (output_size, 2 * hidden), lin_bound),
        "b_lin": u(ks[9], (output_size,), lin_bound),
    }


def _gate_cols(w, H, GP=128):
    """(4H, D) in PyTorch gate-row order [i, f, g, o] -> (D, 4*GP) in kernel order [i, f, o, g],
    each gate lane-padded from H to GP (zeros in the upper GP-H lanes)."""
    i, f, g, o = (w[k * H:(k + 1) * H].T for k in range(4))      # each (D, H)
    pad = lambda m: jnp.pad(m, ((0, 0), (0, GP - H)))
    return jnp.concatenate([pad(i), pad(f), pad(o), pad(g)], axis=1)


def pack_params(raw, GP=128):
    """Pack PyTorch-style weights into the 2 weight operands the kernel expects."""
    H = raw["w_hh_f"].shape[1]
    I = raw["w_ih_f"].shape[1]
    feat = I + 1
    IP = feat + ((-feat) % 8)

    def wx_block(w_ih, b_ih, b_hh):
        wx = _gate_cols(w_ih, H, GP)                             # (I, 4*GP)
        b = _gate_cols((b_ih + b_hh)[:, None], H, GP)            # (1, 4*GP) bias row
        blk = jnp.concatenate([wx, b], axis=0)                   # (I+1, 4*GP)
        return jnp.pad(blk, ((0, IP - feat), (0, 0)))            # (IP, 4*GP)

    wh = jnp.pad(_gate_cols(raw["w_hh_f"], H, GP), ((0, GP - H), (0, 0)))    # (GP, 4*GP)
    w_big = jnp.concatenate(
        [wx_block(raw["w_ih_f"], raw["b_ih_f"], raw["b_hh_f"]),
         wx_block(raw["w_ih_b"], raw["b_ih_b"], raw["b_hh_b"]),
         wh], axis=0)                                            # (2*IP + GP, 4*GP)

    wl = raw["w_lin"]                                            # (O, 2H)
    w_out = jnp.concatenate(
        [jnp.pad(wl[:, :H].T, ((0, GP - H), (0, 0))),
         jnp.pad(wl[:, H:].T, ((0, GP - H), (0, 0))),
         raw["b_lin"][None, :]], axis=0)                         # (2*GP + 1, O)
    return {"w_big": w_big, "w_out": w_out}


def _reference_forward(x_btI, raw):
    """Pure-JAX f32 reference of the same forward pass (PyTorch gate order / layout)."""
    B, T, I = x_btI.shape
    H = raw["w_hh_f"].shape[1]

    def cell(x_t, h, c, w_ih, w_hh, b_ih, b_hh):
        g = x_t @ w_ih.T + h @ w_hh.T + b_ih + b_hh
        i = jax.nn.sigmoid(g[:, :H]); f = jax.nn.sigmoid(g[:, H:2 * H])
        gg = jnp.tanh(g[:, 2 * H:3 * H]); o = jax.nn.sigmoid(g[:, 3 * H:])
        c = f * c + i * gg
        return o * jnp.tanh(c), c

    h = jnp.zeros((B, H), jnp.float32); c = jnp.zeros((B, H), jnp.float32)
    for t in range(T):
        h, c = cell(x_btI[:, t], h, c,
                    raw["w_ih_f"], raw["w_hh_f"], raw["b_ih_f"], raw["b_hh_f"])
    # Backward-direction output at position T-1 == first backward step from zero state.
    hb, _ = cell(x_btI[:, T - 1], jnp.zeros((B, H), jnp.float32),
                 jnp.zeros((B, H), jnp.float32),
                 raw["w_ih_b"], raw["w_hh_b"], raw["b_ih_b"], raw["b_hh_b"])
    feat = jnp.concatenate([h, hb], axis=-1)
    return feat @ raw["w_lin"].T + raw["b_lin"]


if __name__ == "__main__":
    key = jax.random.PRNGKey(0)
    k_x, k_p = jax.random.split(key)

    B, T, I, H, O = 2, 8, 7, 64, 3
    x = jax.random.normal(k_x, (B, T, I), jnp.float32)
    raw = init_raw_params(k_p, input_size=I, hidden=H, output_size=O)
    kparams = pack_params(raw)

    out = jax.block_until_ready(lstm_model_forward(x, kparams))
    ref = _reference_forward(x, raw)

    assert out.shape == (B, O)
    assert jnp.allclose(out, ref, atol=1e-4, rtol=1e-4), "mismatch vs JAX reference"

    print("KERNEL_OK")
</pallas_src>

<mosaic_0001>
module attributes {stable_mosaic.version = 11 : i64} {
  func.func @_bilstm_kernel(%arg0: memref<64x8xf32, #tpu.memory_space<vmem>>, %arg1: memref<144x512xf32, #tpu.memory_space<vmem>>, %arg2: memref<257x3xf32, #tpu.memory_space<vmem>>, %arg3: memref<8x3xf32, #tpu.memory_space<vmem>>) attributes {dimension_semantics = [], scalar_prefetch = 0 : i64, scratch_operands = 0 : i64, tpu.core_type = #tpu.core_type<tc>} {
    %c0 = arith.constant 0 : index
    %c0_0 = arith.constant 0 : index
    %0 = vector.load %arg0[%c0, %c0_0] : memref<64x8xf32, #tpu.memory_space<vmem>>, vector<64x8xf32>
    %c0_1 = arith.constant 0 : index
    %c0_2 = arith.constant 0 : index
    %1 = vector.load %arg1[%c0_1, %c0_2] : memref<144x512xf32, #tpu.memory_space<vmem>>, vector<8x512xf32>
    %c8 = arith.constant 8 : index
    %c0_3 = arith.constant 0 : index
    %2 = vector.load %arg1[%c8, %c0_3] : memref<144x512xf32, #tpu.memory_space<vmem>>, vector<8x512xf32>
    %c16 = arith.constant 16 : index
    %c0_4 = arith.constant 0 : index
    %3 = vector.load %arg1[%c16, %c0_4] : memref<144x512xf32, #tpu.memory_space<vmem>>, vector<128x512xf32>
    %cst = arith.constant dense<0.000000e+00> : vector<64x512xf32>
    %4 = tpu.matmul %0, %1, %cst {dimension_numbers = #tpu.dot_dimension_numbers<[1], [0], [0], [1], [0, 0, 1, 1], [], []>} : vector<64x8xf32>, vector<8x512xf32>, vector<64x512xf32> -> vector<64x512xf32>
    %cst_5 = arith.constant 0.000000e+00 : f32
    %5 = vector.broadcast %cst_5 : f32 to vector<8x128xf32>
    %cst_6 = arith.constant 0.000000e+00 : f32
    %6 = vector.broadcast %cst_6 : f32 to vector<8x128xf32>
    %7 = vector.extract_strided_slice %4 {offsets = [0, 0], sizes = [8, 512], strides = [1, 1]} : vector<64x512xf32> to vector<8x512xf32>
    %cst_7 = arith.constant dense<0.000000e+00> : vector<8x512xf32>
    %8 = tpu.matmul %5, %3, %cst_7 {dimension_numbers = #tpu.dot_dimension_numbers<[1], [0], [0], [1], [0, 0, 1, 1], [], []>} : vector<8x128xf32>, vector<128x512xf32>, vector<8x512xf32> -> vector<8x512xf32>
    %9 = arith.addf %7, %8 : vector<8x512xf32>
    %10 = vector.extract_strided_slice %9 {offsets = [0, 0], sizes = [8, 384], strides = [1, 1]} : vector<8x512xf32> to vector<8x384xf32>
    %cst_8 = arith.constant 5.000000e-01 : f32
    %11 = vector.broadcast %cst_8 : f32 to vector<8x384xf32>
    %12 = arith.mulf %11, %10 : vector<8x384xf32>
    %13 = math.tanh %12 : vector<8x384xf32>
    %cst_9 = arith.constant 5.000000e-01 : f32
    %14 = vector.broadcast %cst_9 : f32 to vector<8x384xf32>
    %15 = arith.mulf %14, %13 : vector<8x384xf32>
    %cst_10 = arith.constant 5.000000e-01 : f32
    %16 = vector.broadcast %cst_10 : f32 to vector<8x384xf32>
    %17 = arith.addf %15, %16 : vector<8x384xf32>
    %18 = vector.extract_strided_slice %9 {offsets = [0, 384], sizes = [8, 128], strides = [1, 1]} : vector<8x512xf32> to vector<8x128xf32>
    %19 = math.tanh %18 : vector<8x128xf32>
    %20 = vector.extract_strided_slice %17 {offsets = [0, 128], sizes = [8, 128], strides = [1, 1]} : vector<8x384xf32> to vector<8x128xf32>
    %21 = arith.mulf %20, %6 : vector<8x128xf32>
    %22 = vector.extract_strided_slice %17 {offsets = [0, 0], sizes = [8, 128], strides = [1, 1]} : vector<8x384xf32> to vector<8x128xf32>
    %23 = arith.mulf %22, %19 : vector<8x128xf32>
    %24 = arith.addf %21, %23 : vector<8x128xf32>
    %25 = vector.extract_strided_slice %17 {offsets = [0, 256], sizes = [8, 128], strides = [1, 1]} : vector<8x384xf32> to vector<8x128xf32>
    %26 = math.tanh %24 : vector<8x128xf32>
    %27 = arith.mulf %25, %26 : vector<8x128xf32>
    %28 = vector.extract_strided_slice %4 {offsets = [8, 0], sizes = [8, 512], strides = [1, 1]} : vector<64x512xf32> to vector<8x512xf32>
    %cst_11 = arith.constant dense<0.000000e+00> : vector<8x512xf32>
    %29 = tpu.matmul %27, %3, %cst_11 {dimension_numbers = #tpu.dot_dimension_numbers<[1], [0], [0], [1], [0, 0, 1, 1], [], []>} : vector<8x128xf32>, vector<128x512xf32>, vector<8x512xf32> -> vector<8x512xf32>
    %30 = arith.addf %28, %29 : vector<8x512xf32>
    %31 = vector.extract_strided_slice %30 {offsets = [0, 0], sizes = [8, 384], strides = [1, 1]} : vector<8x512xf32> to vector<8x384xf32>
    %cst_12 = arith.constant 5.000000e-01 : f32
    %32 = vector.broadcast %cst_12 : f32 to vector<8x384xf32>
    %33 = arith.mulf %32, %31 : vector<8x384xf32>
    %34 = math.tanh %33 : vector<8x384xf32>
    %cst_13 = arith.constant 5.000000e-01 : f32
    %35 = vector.broadcast %cst_13 : f32 to vector<8x384xf32>
    %36 = arith.mulf %35, %34 : vector<8x384xf32>
    %cst_14 = arith.constant 5.000000e-01 : f32
    %37 = vector.broadcast %cst_14 : f32 to vector<8x384xf32>
    %38 = arith.addf %36, %37 : vector<8x384xf32>
    %39 = vector.extract_strided_slice %30 {offsets = [0, 384], sizes = [8, 128], strides = [1, 1]} : vector<8x512xf32> to vector<8x128xf32>
    %40 = math.tanh %39 : vector<8x128xf32>
    %41 = vector.extract_strided_slice %38 {offsets = [0, 128], sizes = [8, 128], strides = [1, 1]} : vector<8x384xf32> to vector<8x128xf32>
    %42 = arith.mulf %41, %24 : vector<8x128xf32>
    %43 = vector.extract_strided_slice %38 {offsets = [0, 0], sizes = [8, 128], strides = [1, 1]} : vector<8x384xf32> to vector<8x128xf32>
    %44 = arith.mulf %43, %40 : vector<8x128xf32>
    %45 = arith.addf %42, %44 : vector<8x128xf32>
    %46 = vector.extract_strided_slice %38 {offsets = [0, 256], sizes = [8, 128], strides = [1, 1]} : vector<8x384xf32> to vector<8x128xf32>
    %47 = math.tanh %45 : vector<8x128xf32>
    %48 = arith.mulf %46, %47 : vector<8x128xf32>
    %49 = vector.extract_strided_slice %4 {offsets = [16, 0], sizes = [8, 512], strides = [1, 1]} : vector<64x512xf32> to vector<8x512xf32>
    %cst_15 = arith.constant dense<0.000000e+00> : vector<8x512xf32>
    %50 = tpu.matmul %48, %3, %cst_15 {dimension_numbers = #tpu.dot_dimension_numbers<[1], [0], [0], [1], [0, 0, 1, 1], [], []>} : vector<8x128xf32>, vector<128x512xf32>, vector<8x512xf32> -> vector<8x512xf32>
    %51 = arith.addf %49, %50 : vector<8x512xf32>
    %52 = vector.extract_strided_slice %51 {offsets = [0, 0], sizes = [8, 384], strides = [1, 1]} : vector<8x512xf32> to vector<8x384xf32>
    %cst_16 = arith.constant 5.000000e-01 : f32
    %53 = vector.broadcast %cst_16 : f32 to vector<8x384xf32>
    %54 = arith.mulf %53, %52 : vector<8x384xf32>
    %55 = math.tanh %54 : vector<8x384xf32>
    %cst_17 = arith.constant 5.000000e-01 : f32
    %56 = vector.broadcast %cst_17 : f32 to vector<8x384xf32>
    %57 = arith.mulf %56, %55 : vector<8x384xf32>
    %cst_18 = arith.constant 5.000000e-01 : f32
    %58 = vector.broadcast %cst_18 : f32 to vector<8x384xf32>
    %59 = arith.addf %57, %58 : vector<8x384xf32>
    %60 = vector.extract_strided_slice %51 {offsets = [0, 384], sizes = [8, 128], strides = [1, 1]} : vector<8x512xf32> to vector<8x128xf32>
    %61 = math.tanh %60 : vector<8x128xf32>
    %62 = vector.extract_strided_slice %59 {offsets = [0, 128], sizes = [8, 128], strides = [1, 1]} : vector<8x384xf32> to vector<8x128xf32>
    %63 = arith.mulf %62, %45 : vector<8x128xf32>
    %64 = vector.extract_strided_slice %59 {offsets = [0, 0], sizes = [8, 128], strides = [1, 1]} : vector<8x384xf32> to vector<8x128xf32>
    %65 = arith.mulf %64, %61 : vector<8x128xf32>
    %66 = arith.addf %63, %65 : vector<8x128xf32>
    %67 = vector.extract_strided_slice %59 {offsets = [0, 256], sizes = [8, 128], strides = [1, 1]} : vector<8x384xf32> to vector<8x128xf32>
    %68 = math.tanh %66 : vector<8x128xf32>
    %69 = arith.mulf %67, %68 : vector<8x128xf32>
    %70 = vector.extract_strided_slice %4 {offsets = [24, 0], sizes = [8, 512], strides = [1, 1]} : vector<64x512xf32> to vector<8x512xf32>
    %cst_19 = arith.constant dense<0.000000e+00> : vector<8x512xf32>
    %71 = tpu.matmul %69, %3, %cst_19 {dimension_numbers = #tpu.dot_dimension_numbers<[1], [0], [0], [1], [0, 0, 1, 1], [], []>} : vector<8x128xf32>, vector<128x512xf32>, vector<8x512xf32> -> vector<8x512xf32>
    %72 = arith.addf %70, %71 : vector<8x512xf32>
    %73 = vector.extract_strided_slice %72 {offsets = [0, 0], sizes = [8, 384], strides = [1, 1]} : vector<8x512xf32> to vector<8x384xf32>
    %cst_20 = arith.constant 5.000000e-01 : f32
    %74 = vector.broadcast %cst_20 : f32 to vector<8x384xf32>
    %75 = arith.mulf %74, %73 : vector<8x384xf32>
    %76 = math.tanh %75 : vector<8x384xf32>
    %cst_21 = arith.constant 5.000000e-01 : f32
    %77 = vector.broadcast %cst_21 : f32 to vector<8x384xf32>
    %78 = arith.mulf %77, %76 : vector<8x384xf32>
    %cst_22 = arith.constant 5.000000e-01 : f32
    %79 = vector.broadcast %cst_22 : f32 to vector<8x384xf32>
    %80 = arith.addf %78, %79 : vector<8x384xf32>
    %81 = vector.extract_strided_slice %72 {offsets = [0, 384], sizes = [8, 128], strides = [1, 1]} : vector<8x512xf32> to vector<8x128xf32>
    %82 = math.tanh %81 : vector<8x128xf32>
    %83 = vector.extract_strided_slice %80 {offsets = [0, 128], sizes = [8, 128], strides = [1, 1]} : vector<8x384xf32> to vector<8x128xf32>
    %84 = arith.mulf %83, %66 : vector<8x128xf32>
    %85 = vector.extract_strided_slice %80 {offsets = [0, 0], sizes = [8, 128], strides = [1, 1]} : vector<8x384xf32> to vector<8x128xf32>
    %86 = arith.mulf %85, %82 : vector<8x128xf32>
    %87 = arith.addf %84, %86 : vector<8x128xf32>
    %88 = vector.extract_strided_slice %80 {offsets = [0, 256], sizes = [8, 128], strides = [1, 1]} : vector<8x384xf32> to vector<8x128xf32>
    %89 = math.tanh %87 : vector<8x128xf32>
    %90 = arith.mulf %88, %89 : vector<8x128xf32>
    %91 = vector.extract_strided_slice %4 {offsets = [32, 0], sizes = [8, 512], strides = [1, 1]} : vector<64x512xf32> to vector<8x512xf32>
    %cst_23 = arith.constant dense<0.000000e+00> : vector<8x512xf32>
    %92 = tpu.matmul %90, %3, %cst_23 {dimension_numbers = #tpu.dot_dimension_numbers<[1], [0], [0], [1], [0, 0, 1, 1], [], []>} : vector<8x128xf32>, vector<128x512xf32>, vector<8x512xf32> -> vector<8x512xf32>
    %93 = arith.addf %91, %92 : vector<8x512xf32>
    %94 = vector.extract_strided_slice %93 {offsets = [0, 0], sizes = [8, 384], strides = [1, 1]} : vector<8x512xf32> to vector<8x384xf32>
    %cst_24 = arith.constant 5.000000e-01 : f32
    %95 = vector.broadcast %cst_24 : f32 to vector<8x384xf32>
    %96 = arith.mulf %95, %94 : vector<8x384xf32>
    %97 = math.tanh %96 : vector<8x384xf32>
    %cst_25 = arith.constant 5.000000e-01 : f32
    %98 = vector.broadcast %cst_25 : f32 to vector<8x384xf32>
    %99 = arith.mulf %98, %97 : vector<8x384xf32>
    %cst_26 = arith.constant 5.000000e-01 : f32
    %100 = vector.broadcast %cst_26 : f32 to vector<8x384xf32>
    %101 = arith.addf %99, %100 : vector<8x384xf32>
    %102 = vector.extract_strided_slice %93 {offsets = [0, 384], sizes = [8, 128], strides = [1, 1]} : vector<8x512xf32> to vector<8x128xf32>
    %103 = math.tanh %102 : vector<8x128xf32>
    %104 = vector.extract_strided_slice %101 {offsets = [0, 128], sizes = [8, 128], strides = [1, 1]} : vector<8x384xf32> to vector<8x128xf32>
    %105 = arith.mulf %104, %87 : vector<8x128xf32>
    %106 = vector.extract_strided_slice %101 {offsets = [0, 0], sizes = [8, 128], strides = [1, 1]} : vector<8x384xf32> to vector<8x128xf32>
    %107 = arith.mulf %106, %103 : vector<8x128xf32>
    %108 = arith.addf %105, %107 : vector<8x128xf32>
    %109 = vector.extract_strided_slice %101 {offsets = [0, 256], sizes = [8, 128], strides = [1, 1]} : vector<8x384xf32> to vector<8x128xf32>
    %110 = math.tanh %108 : vector<8x128xf32>
    %111 = arith.mulf %109, %110 : vector<8x128xf32>
    %112 = vector.extract_strided_slice %4 {offsets = [40, 0], sizes = [8, 512], strides = [1, 1]} : vector<64x512xf32> to vector<8x512xf32>
    %cst_27 = arith.constant dense<0.000000e+00> : vector<8x512xf32>
    %113 = tpu.matmul %111, %3, %cst_27 {dimension_numbers = #tpu.dot_dimension_numbers<[1], [0], [0], [1], [0, 0, 1, 1], [], []>} : vector<8x128xf32>, vector<128x512xf32>, vector<8x512xf32> -> vector<8x512xf32>
    %114 = arith.addf %112, %113 : vector<8x512xf32>
    %115 = vector.extract_strided_slice %114 {offsets = [0, 0], sizes = [8, 384], strides = [1, 1]} : vector<8x512xf32> to vector<8x384xf32>
    %cst_28 = arith.constant 5.000000e-01 : f32
    %116 = vector.broadcast %cst_28 : f32 to vector<8x384xf32>
    %117 = arith.mulf %116, %115 : vector<8x384xf32>
    %118 = math.tanh %117 : vector<8x384xf32>
    %cst_29 = arith.constant 5.000000e-01 : f32
    %119 = vector.broadcast %cst_29 : f32 to vector<8x384xf32>
    %120 = arith.mulf %119, %118 : vector<8x384xf32>
    %cst_30 = arith.constant 5.000000e-01 : f32
    %121 = vector.broadcast %cst_30 : f32 to vector<8x384xf32>
    %122 = arith.addf %120, %121 : vector<8x384xf32>
    %123 = vector.extract_strided_slice %114 {offsets = [0, 384], sizes = [8, 128], strides = [1, 1]} : vector<8x512xf32> to vector<8x128xf32>
    %124 = math.tanh %123 : vector<8x128xf32>
    %125 = vector.extract_strided_slice %122 {offsets = [0, 128], sizes = [8, 128], strides = [1, 1]} : vector<8x384xf32> to vector<8x128xf32>
    %126 = arith.mulf %125, %108 : vector<8x128xf32>
    %127 = vector.extract_strided_slice %122 {offsets = [0, 0], sizes = [8, 128], strides = [1, 1]} : vector<8x384xf32> to vector<8x128xf32>
    %128 = arith.mulf %127, %124 : vector<8x128xf32>
    %129 = arith.addf %126, %128 : vector<8x128xf32>
    %130 = vector.extract_strided_slice %122 {offsets = [0, 256], sizes = [8, 128], strides = [1, 1]} : vector<8x384xf32> to vector<8x128xf32>
    %131 = math.tanh %129 : vector<8x128xf32>
    %132 = arith.mulf %130, %131 : vector<8x128xf32>
    %133 = vector.extract_strided_slice %4 {offsets = [48, 0], sizes = [8, 512], strides = [1, 1]} : vector<64x512xf32> to vector<8x512xf32>
    %cst_31 = arith.constant dense<0.000000e+00> : vector<8x512xf32>
    %134 = tpu.matmul %132, %3, %cst_31 {dimension_numbers = #tpu.dot_dimension_numbers<[1], [0], [0], [1], [0, 0, 1, 1], [], []>} : vector<8x128xf32>, vector<128x512xf32>, vector<8x512xf32> -> vector<8x512xf32>
    %135 = arith.addf %133, %134 : vector<8x512xf32>
    %136 = vector.extract_strided_slice %135 {offsets = [0, 0], sizes = [8, 384], strides = [1, 1]} : vector<8x512xf32> to vector<8x384xf32>
    %cst_32 = arith.constant 5.000000e-01 : f32
    %137 = vector.broadcast %cst_32 : f32 to vector<8x384xf32>
    %138 = arith.mulf %137, %136 : vector<8x384xf32>
    %139 = math.tanh %138 : vector<8x384xf32>
    %cst_33 = arith.constant 5.000000e-01 : f32
    %140 = vector.broadcast %cst_33 : f32 to vector<8x384xf32>
    %141 = arith.mulf %140, %139 : vector<8x384xf32>
    %cst_34 = arith.constant 5.000000e-01 : f32
    %142 = vector.broadcast %cst_34 : f32 to vector<8x384xf32>
    %143 = arith.addf %141, %142 : vector<8x384xf32>
    %144 = vector.extract_strided_slice %135 {offsets = [0, 384], sizes = [8, 128], strides = [1, 1]} : vector<8x512xf32> to vector<8x128xf32>
    %145 = math.tanh %144 : vector<8x128xf32>
    %146 = vector.extract_strided_slice %143 {offsets = [0, 128], sizes = [8, 128], strides = [1, 1]} : vector<8x384xf32> to vector<8x128xf32>
    %147 = arith.mulf %146, %129 : vector<8x128xf32>
    %148 = vector.extract_strided_slice %143 {offsets = [0, 0], sizes = [8, 128], strides = [1, 1]} : vector<8x384xf32> to vector<8x128xf32>
    %149 = arith.mulf %148, %145 : vector<8x128xf32>
    %150 = arith.addf %147, %149 : vector<8x128xf32>
    %151 = vector.extract_strided_slice %143 {offsets = [0, 256], sizes = [8, 128], strides = [1, 1]} : vector<8x384xf32> to vector<8x128xf32>
    %152 = math.tanh %150 : vector<8x128xf32>
    %153 = arith.mulf %151, %152 : vector<8x128xf32>
    %154 = vector.extract_strided_slice %4 {offsets = [56, 0], sizes = [8, 512], strides = [1, 1]} : vector<64x512xf32> to vector<8x512xf32>
    %cst_35 = arith.constant dense<0.000000e+00> : vector<8x512xf32>
    %155 = tpu.matmul %153, %3, %cst_35 {dimension_numbers = #tpu.dot_dimension_numbers<[1], [0], [0], [1], [0, 0, 1, 1], [], []>} : vector<8x128xf32>, vector<128x512xf32>, vector<8x512xf32> -> vector<8x512xf32>
    %156 = arith.addf %154, %155 : vector<8x512xf32>
    %157 = vector.extract_strided_slice %156 {offsets = [0, 0], sizes = [8, 384], strides = [1, 1]} : vector<8x512xf32> to vector<8x384xf32>
    %cst_36 = arith.constant 5.000000e-01 : f32
    %158 = vector.broadcast %cst_36 : f32 to vector<8x384xf32>
    %159 = arith.mulf %158, %157 : vector<8x384xf32>
    %160 = math.tanh %159 : vector<8x384xf32>
    %cst_37 = arith.constant 5.000000e-01 : f32
    %161 = vector.broadcast %cst_37 : f32 to vector<8x384xf32>
    %162 = arith.mulf %161, %160 : vector<8x384xf32>
    %cst_38 = arith.constant 5.000000e-01 : f32
    %163 = vector.broadcast %cst_38 : f32 to vector<8x384xf32>
    %164 = arith.addf %162, %163 : vector<8x384xf32>
    %165 = vector.extract_strided_slice %156 {offsets = [0, 384], sizes = [8, 128], strides = [1, 1]} : vector<8x512xf32> to vector<8x128xf32>
    %166 = math.tanh %165 : vector<8x128xf32>
    %167 = vector.extract_strided_slice %164 {offsets = [0, 128], sizes = [8, 128], strides = [1, 1]} : vector<8x384xf32> to vector<8x128xf32>
    %168 = arith.mulf %167, %150 : vector<8x128xf32>
    %169 = vector.extract_strided_slice %164 {offsets = [0, 0], sizes = [8, 128], strides = [1, 1]} : vector<8x384xf32> to vector<8x128xf32>
    %170 = arith.mulf %169, %166 : vector<8x128xf32>
    %171 = arith.addf %168, %170 : vector<8x128xf32>
    %172 = vector.extract_strided_slice %164 {offsets = [0, 256], sizes = [8, 128], strides = [1, 1]} : vector<8x384xf32> to vector<8x128xf32>
    %173 = math.tanh %171 : vector<8x128xf32>
    %174 = arith.mulf %172, %173 : vector<8x128xf32>
    %175 = vector.extract_strided_slice %0 {offsets = [56, 0], sizes = [8, 8], strides = [1, 1]} : vector<64x8xf32> to vector<8x8xf32>
    %cst_39 = arith.constant dense<0.000000e+00> : vector<8x512xf32>
    %176 = tpu.matmul %175, %2, %cst_39 {dimension_numbers = #tpu.dot_dimension_numbers<[1], [0], [0], [1], [0, 0, 1, 1], [], []>} : vector<8x8xf32>, vector<8x512xf32>, vector<8x512xf32> -> vector<8x512xf32>
    %177 = vector.extract_strided_slice %176 {offsets = [0, 0], sizes = [8, 128], strides = [1, 1]} : vector<8x512xf32> to vector<8x128xf32>
    %cst_40 = arith.constant 5.000000e-01 : f32
    %178 = vector.broadcast %cst_40 : f32 to vector<8x128xf32>
    %179 = arith.mulf %178, %177 : vector<8x128xf32>
    %180 = math.tanh %179 : vector<8x128xf32>
    %cst_41 = arith.constant 5.000000e-01 : f32
    %181 = vector.broadcast %cst_41 : f32 to vector<8x128xf32>
    %182 = arith.mulf %181, %180 : vector<8x128xf32>
    %cst_42 = arith.constant 5.000000e-01 : f32
    %183 = vector.broadcast %cst_42 : f32 to vector<8x128xf32>
    %184 = arith.addf %182, %183 : vector<8x128xf32>
    %185 = vector.extract_strided_slice %176 {offsets = [0, 384], sizes = [8, 128], strides = [1, 1]} : vector<8x512xf32> to vector<8x128xf32>
    %186 = math.tanh %185 : vector<8x128xf32>
    %187 = arith.mulf %184, %186 : vector<8x128xf32>
    %188 = vector.extract_strided_slice %176 {offsets = [0, 256], sizes = [8, 128], strides = [1, 1]} : vector<8x512xf32> to vector<8x128xf32>
    %cst_43 = arith.constant 5.000000e-01 : f32
    %189 = vector.broadcast %cst_43 : f32 to vector<8x128xf32>
    %190 = arith.mulf %189, %188 : vector<8x128xf32>
    %191 = math.tanh %190 : vector<8x128xf32>
    %cst_44 = arith.constant 5.000000e-01 : f32
    %192 = vector.broadcast %cst_44 : f32 to vector<8x128xf32>
    %193 = arith.mulf %192, %191 : vector<8x128xf32>
    %cst_45 = arith.constant 5.000000e-01 : f32
    %194 = vector.broadcast %cst_45 : f32 to vector<8x128xf32>
    %195 = arith.addf %193, %194 : vector<8x128xf32>
    %196 = math.tanh %187 : vector<8x128xf32>
    %197 = arith.mulf %195, %196 : vector<8x128xf32>
    %c0_46 = arith.constant 0 : index
    %c0_47 = arith.constant 0 : index
    %198 = vector.load %arg2[%c0_46, %c0_47] : memref<257x3xf32, #tpu.memory_space<vmem>>, vector<128x3xf32>
    %cst_48 = arith.constant dense<0.000000e+00> : vector<8x3xf32>
    %199 = tpu.matmul %174, %198, %cst_48 {dimension_numbers = #tpu.dot_dimension_numbers<[1], [0], [0], [1], [0, 0, 1, 1], [], []>} : vector<8x128xf32>, vector<128x3xf32>, vector<8x3xf32> -> vector<8x3xf32>
    %c128 = arith.constant 128 : index
    %c0_49 = arith.constant 0 : index
    %200 = vector.load %arg2[%c128, %c0_49] : memref<257x3xf32, #tpu.memory_space<vmem>>, vector<128x3xf32>
    %cst_50 = arith.constant dense<0.000000e+00> : vector<8x3xf32>
    %201 = tpu.matmul %197, %200, %cst_50 {dimension_numbers = #tpu.dot_dimension_numbers<[1], [0], [0], [1], [0, 0, 1, 1], [], []>} : vector<8x128xf32>, vector<128x3xf32>, vector<8x3xf32> -> vector<8x3xf32>
    %202 = arith.addf %199, %201 : vector<8x3xf32>
    %c256 = arith.constant 256 : index
    %c0_51 = arith.constant 0 : index
    %203 = vector.load %arg2[%c256, %c0_51] : memref<257x3xf32, #tpu.memory_space<vmem>>, vector<1x3xf32>
    %204 = vector.broadcast %203 : vector<1x3xf32> to vector<8x3xf32>
    %205 = arith.addf %202, %204 : vector<8x3xf32>
    %c0_52 = arith.constant 0 : index
    %c0_53 = arith.constant 0 : index
    %206 = vector.load %arg3[%c0_52, %c0_53] : memref<8x3xf32, #tpu.memory_space<vmem>>, vector<8x3xf32>
    tpu.vector_store %arg3[%c0_52, %c0_53], %205 {strides = array<i32>} : memref<8x3xf32, #tpu.memory_space<vmem>>, vector<8x3xf32>,
    return
  }
}

</mosaic_0001>

<llo_original>
// kernel: lstm_model_forward.1
$region0: #{lstm_model_forward.1}
  #allocation0 [shape = 'u32[]', space=smem, size = 0x4, offset = 0x4, fixed_abs, tag = 'smem constant byte address 0x4 - core index']
  #allocation1 [shape = 'u32[144,128]{1,0:T(1,128)}', space=vmem, size = 0x12000, scoped, tag = 'internal scratch']
  %s0 = inlined_call_operand.vmem [shape: f32[64,8], index: 0, kind: input, shape index: {}]
  %s1 = inlined_call_operand.hbm [shape: f32[144,512], index: 1, kind: input, shape index: {}]
  %s2 = inlined_call_operand.vmem [shape: f32[257,3], index: 2, kind: input, shape index: {}]
  %s3 = inlined_call_operand.vmem [shape: f32[8,3], index: 3, kind: output, shape index: {}]
  %s4 = sld [smem:[#allocation0]]
  $region26: #{lstm_model_forward.1} parent=0
    _
  %s6 = ssub.s32 1, %s4
  %s7 = scalar_select 0, %s6, %s4
  $region1: #{lstm_model_forward.1} parent=0
    #allocation2 [shape = 'u8[294912]{0}', space=vmem, size = 0x48000, scoped, tag = 'input window, operand 1, single buffered']
    #allocation3 [shape = 's32[1]{0}', space=sflag, size = 0x4, scoped, tag = 'scoped memory for lstm_model_forward.1']
    %8 = vsyncpa [#allocation3], 0
    // Predicated region
    $region2: #{lstm_model_forward.1} parent=1 // pred_check
      _
    $region3: #{lstm_model_forward.1} parent=1 // pred_check_branch
      %10 = sbr.rel (0) target = $region5
    $region4: #{lstm_model_forward.1} parent=1 // pred_region
      _
    $region5: #{lstm_model_forward.1} parent=1 // pred_fallthru
      _
    // Predicated region
    $region6: #{lstm_model_forward.1} parent=1 // pred_check
      _
    $region7: #{lstm_model_forward.1} parent=1 // pred_check_branch
      %12 = sbr.rel (0) target = $region9
    $region8: #{lstm_model_forward.1} parent=1 // pred_region
      %s14 = ssub.s32 9216, 9216
      %15 = vsyncadd [#allocation3], %s14
      %s16 = sshll.u32 [#allocation2], 4
      %s17 = int_to_ptr.vmem [resolvable:$true] %s16
      %22 = dma.hbm_to_vmem [thread:$0]  %s1, 9216, %s17, [#allocation3], 512, 512, 32
    $region9: #{lstm_model_forward.1} parent=1 // pred_fallthru
      _
    // Predicated region
    $region10: #{lstm_model_forward.1} parent=1 // pred_check
      _
    $region11: #{lstm_model_forward.1} parent=1 // pred_check_branch
      %24 = sbr.rel (0) target = $region13
    $region12: #{lstm_model_forward.1} parent=1 // pred_region
      _
    $region13: #{lstm_model_forward.1} parent=1 // pred_fallthru
      _
    // Predicated region
    $region14: #{lstm_model_forward.1} parent=1 // pred_check
      _
    $region15: #{lstm_model_forward.1} parent=1 // pred_check_branch
      %26 = sbr.rel (0) target = $region17
    $region16: #{lstm_model_forward.1} parent=1 // pred_region
      %27 = dma.done [#allocation3], 9216
    $region17: #{lstm_model_forward.1} parent=1 // pred_fallthru
      _
    %v28 = vld [vmem:[%s0] sm:$0xff]
    %v29 = vld [vmem:[%s0 + $0x8] sm:$0xff]
    %v30 = vld [vmem:[%s0 + $0x10] sm:$0xff]
    %v31 = vld [vmem:[%s0 + $0x18] sm:$0xff]
    %v32 = vld [vmem:[%s0 + $0x20] sm:$0xff]
    %v33 = vld [vmem:[%s0 + $0x28] sm:$0xff]
    %v34 = vld [vmem:[%s0 + $0x30] sm:$0xff]
    %v35 = vld [vmem:[%s0 + $0x38] sm:$0xff]
    %v36 = vld [vmem:[#allocation2] sm:$0xff]
    %v37 = vld [vmem:[#allocation2 + $0x8] sm:$0xff]
    %v38 = vld [vmem:[#allocation2 + $0x10] sm:$0xff]
    %v39 = vld [vmem:[#allocation2 + $0x18] sm:$0xff]
    %v40 = vld [vmem:[#allocation2 + $0x20] sm:$0xff]
    %v41 = vld [vmem:[#allocation2 + $0x28] sm:$0xff]
    %v42 = vld [vmem:[#allocation2 + $0x30] sm:$0xff]
    %v43 = vld [vmem:[#allocation2 + $0x38] sm:$0xff]
    %v44 = vld [vmem:[#allocation2 + $0x40] sm:$0xff]
    %v45 = vld [vmem:[#allocation2 + $0x48] sm:$0xff]
    %v46 = vld [vmem:[#allocation2 + $0x50] sm:$0xff]
    %v47 = vld [vmem:[#allocation2 + $0x58] sm:$0xff]
    %v48 = vld [vmem:[#allocation2 + $0x60] sm:$0xff]
    %v49 = vld [vmem:[#allocation2 + $0x68] sm:$0xff]
    %v50 = vld [vmem:[#allocation2 + $0x70] sm:$0xff]
    %v51 = vld [vmem:[#allocation2 + $0x78] sm:$0xff]
    %v52 = vld [vmem:[#allocation2 + $0x80] sm:$0xff]
    %v53 = vld [vmem:[#allocation2 + $0x88] sm:$0xff]
    %v54 = vld [vmem:[#allocation2 + $0x90] sm:$0xff]
    %v55 = vld [vmem:[#allocation2 + $0x98] sm:$0xff]
    %v56 = vld [vmem:[#allocation2 + $0xa0] sm:$0xff]
    %v57 = vld [vmem:[#allocation2 + $0xa8] sm:$0xff]
    %v58 = vld [vmem:[#allocation2 + $0xb0] sm:$0xff]
    %v59 = vld [vmem:[#allocation2 + $0xb8] sm:$0xff]
    %v60 = vld [vmem:[#allocation2 + $0xc0] sm:$0xff]
    %v61 = vld [vmem:[#allocation2 + $0xc8] sm:$0xff]
    %v62 = vld [vmem:[#allocation2 + $0xd0] sm:$0xff]
    %v63 = vld [vmem:[#allocation2 + $0xd8] sm:$0xff]
    %v64 = vld [vmem:[#allocation2 + $0xe0] sm:$0xff]
    %v65 = vld [vmem:[#allocation2 + $0xe8] sm:$0xff]
    %v66 = vld [vmem:[#allocation2 + $0xf0] sm:$0xff]
    %v67 = vld [vmem:[#allocation2 + $0xf8] sm:$0xff]
    %v68 = vld [vmem:[#allocation2 + $0x100] sm:$0xff]
    %v69 = vld [vmem:[#allocation2 + $0x108] sm:$0xff]
    %v70 = vld [vmem:[#allocation2 + $0x110] sm:$0xff]
    %v71 = vld [vmem:[#allocation2 + $0x118] sm:$0xff]
    %v72 = vld [vmem:[#allocation2 + $0x120] sm:$0xff]
    %v73 = vld [vmem:[#allocation2 + $0x128] sm:$0xff]
    %v74 = vld [vmem:[#allocation2 + $0x130] sm:$0xff]
    %v75 = vld [vmem:[#allocation2 + $0x138] sm:$0xff]
    %v76 = vld [vmem:[#allocation2 + $0x140] sm:$0xff]
    %v77 = vld [vmem:[#allocation2 + $0x148] sm:$0xff]
    %v78 = vld [vmem:[#allocation2 + $0x150] sm:$0xff]
    %v79 = vld [vmem:[#allocation2 + $0x158] sm:$0xff]
    %v80 = vld [vmem:[#allocation2 + $0x160] sm:$0xff]
    %v81 = vld [vmem:[#allocation2 + $0x168] sm:$0xff]
    %v82 = vld [vmem:[#allocation2 + $0x170] sm:$0xff]
    %v83 = vld [vmem:[#allocation2 + $0x178] sm:$0xff]
    %v84 = vld [vmem:[#allocation2 + $0x180] sm:$0xff]
    %v85 = vld [vmem:[#allocation2 + $0x188] sm:$0xff]
    %v86 = vld [vmem:[#allocation2 + $0x190] sm:$0xff]
    %v87 = vld [vmem:[#allocation2 + $0x198] sm:$0xff]
    %v88 = vld [vmem:[#allocation2 + $0x1a0] sm:$0xff]
    %v89 = vld [vmem:[#allocation2 + $0x1a8] sm:$0xff]
    %v90 = vld [vmem:[#allocation2 + $0x1b0] sm:$0xff]
    %v91 = vld [vmem:[#allocation2 + $0x1b8] sm:$0xff]
    %v92 = vld [vmem:[#allocation2 + $0x1c0] sm:$0xff]
    %v93 = vld [vmem:[#allocation2 + $0x1c8] sm:$0xff]
    %v94 = vld [vmem:[#allocation2 + $0x1d0] sm:$0xff]
    %v95 = vld [vmem:[#allocation2 + $0x1d8] sm:$0xff]
    %v96 = vld [vmem:[#allocation2 + $0x1e0] sm:$0xff]
    %v97 = vld [vmem:[#allocation2 + $0x1e8] sm:$0xff]
    %v98 = vld [vmem:[#allocation2 + $0x1f0] sm:$0xff]
    %v99 = vld [vmem:[#allocation2 + $0x1f8] sm:$0xff]
    %v100 = vld [vmem:[#allocation2 + $0x200] sm:$0xff]
    %v101 = vld [vmem:[#allocation2 + $0x208] sm:$0xff]
    %v102 = vld [vmem:[#allocation2 + $0x210] sm:$0xff]
    %v103 = vld [vmem:[#allocation2 + $0x218] sm:$0xff]
    %v104 = vld [vmem:[#allocation2 + $0x220] sm:$0xff]
    %v105 = vld [vmem:[#allocation2 + $0x228] sm:$0xff]
    %v106 = vld [vmem:[#allocation2 + $0x230] sm:$0xff]
    %v107 = vld [vmem:[#allocation2 + $0x238] sm:$0xff]
    %vm108 = vcmask 64512
    %v110 = vsel %vm108, %v28, 0
    %v113 = vsel %vm108, %v29, 0
    %v116 = vsel %vm108, %v30, 0
    %v119 = vsel %vm108, %v31, 0
    %v122 = vsel %vm108, %v32, 0
    %v125 = vsel %vm108, %v33, 0
    %v128 = vsel %vm108, %v34, 0
    %v131 = vsel %vm108, %v35, 0
    %133 = vmatprep.subr.mxu0 %v37
    %134 = vmatpush1.msra.mxu0 %v36
    %135 = vmatprep.subr.mxu0 0.0
    %136 = vmatpush1.msra.mxu0 0.0
    %137 = vmatprep.subr.mxu0 0.0
    %138 = vmatpush1.msra.mxu0 0.0
    %139 = vmatprep.subr.mxu0 0.0
    %140 = vmatpush1.msra.mxu0 0.0
    %141 = vmatprep.subr.mxu0 0.0
    %142 = vmatpush1.msra.mxu0 0.0
    %143 = vmatprep.subr.mxu0 0.0
    %144 = vmatpush1.msra.mxu0 0.0
    %145 = vmatprep.subr.mxu0 0.0
    %146 = vmatpush1.msra.mxu0 0.0
    %147 = vmatprep.subr.mxu0 0.0
    %148 = vmatpush1.msra.mxu0 0.0
    %149 = vmatprep.subr.mxu0 0.0
    %150 = vmatpush1.msra.mxu0 0.0
    %151 = vmatprep.subr.mxu0 0.0
    %152 = vmatpush1.msra.mxu0 0.0
    %153 = vmatprep.subr.mxu0 0.0
    %154 = vmatpush1.msra.mxu0 0.0
    %155 = vmatprep.subr.mxu0 0.0
    %156 = vmatpush1.msra.mxu0 0.0
    %157 = vmatprep.subr.mxu0 0.0
    %158 = vmatpush1.msra.mxu0 0.0
    %159 = vmatprep.subr.mxu0 0.0
    %160 = vmatpush1.msra.mxu0 0.0
    %161 = vmatprep.subr.mxu0 0.0
    %162 = vmatpush1.msra.mxu0 0.0
    %163 = vmatprep.subr.mxu0 0.0
    %164 = vmatpush1.msra.mxu0 0.0
    %165 = vmatprep.subr.mxu0 0.0
    %166 = vmatpush1.msra.mxu0 0.0
    %167 = vmatprep.subr.mxu0 0.0
    %168 = vmatpush1.msra.mxu0 0.0
    %169 = vmatprep.subr.mxu0 0.0
    %170 = vmatpush1.msra.mxu0 0.0
    %171 = vmatprep.subr.mxu0 0.0
    %172 = vmatpush1.msra.mxu0 0.0
    %173 = vmatprep.subr.mxu0 0.0
    %174 = vmatpush1.msra.mxu0 0.0
    %175 = vmatprep.subr.mxu0 0.0
    %176 = vmatpush1.msra.mxu0 0.0
    %177 = vmatprep.subr.mxu0 0.0
    %178 = vmatpush1.msra.mxu0 0.0
    %179 = vmatprep.subr.mxu0 0.0
    %180 = vmatpush1.msra.mxu0 0.0
    %181 = vmatprep.subr.mxu0 0.0
    %182 = vmatpush1.msra.mxu0 0.0
    %183 = vmatprep.subr.mxu0 0.0
    %184 = vmatpush1.msra.mxu0 0.0
    %185 = vmatprep.subr.mxu0 0.0
    %186 = vmatpush1.msra.mxu0 0.0
    %187 = vmatprep.subr.mxu0 0.0
    %188 = vmatpush1.msra.mxu0 0.0
    %189 = vmatprep.subr.mxu0 0.0
    %190 = vmatpush1.msra.mxu0 0.0
    %191 = vmatprep.subr.mxu0 0.0
    %192 = vmatpush1.msra.mxu0 0.0
    %193 = vmatprep.subr.mxu0 0.0
    %194 = vmatpush1.msra.mxu0 0.0
    %195 = vmatprep.subr.mxu0 0.0
    %196 = vmatpush1.msra.mxu0 0.0
    %197 = vmatprep.mubr.f32.mxu0 0.0
    %198 = vmatmul.mubr.f32.gmra.mrb[0].mxu0 %v110
    %v199 = vpop.f32.mrb[0].mxu0
    %v200 = vadd.f32 0.0, %v199
    %v201 = vpop.f32.mrb[0].mxu0
    %v202 = vadd.f32 0.0, %v201
    %203 = vmatprep.mubr.f32.mxu0 0.0
    %204 = vmatmul.mubr.f32.gmra.mrb[0].mxu0 %v113
    %v205 = vpop.f32.mrb[0].mxu0
    %v206 = vadd.f32 0.0, %v205
    %v207 = vpop.f32.mrb[0].mxu0
    %v208 = vadd.f32 0.0, %v207
    %209 = vmatprep.mubr.f32.mxu0 0.0
    %210 = vmatmul.mubr.f32.gmra.mrb[0].mxu0 %v116
    %v211 = vpop.f32.mrb[0].mxu0
    %v212 = vadd.f32 0.0, %v211
    %v213 = vpop.f32.mrb[0].mxu0
    %v214 = vadd.f32 0.0, %v213
    %215 = vmatprep.mubr.f32.mxu0 0.0
    %216 = vmatmul.mubr.f32.gmra.mrb[0].mxu0 %v119
    %v217 = vpop.f32.mrb[0].mxu0
    %v218 = vadd.f32 0.0, %v217
    %v219 = vpop.f32.mrb[0].mxu0
    %v220 = vadd.f32 0.0, %v219
    %221 = vmatprep.mubr.f32.mxu0 0.0
    %222 = vmatmul.mubr.f32.gmra.mrb[0].mxu0 %v122
    %v223 = vpop.f32.mrb[0].mxu0
    %v224 = vadd.f32 0.0, %v223
    %v225 = vpop.f32.mrb[0].mxu0
    %v226 = vadd.f32 0.0, %v225
    %227 = vmatprep.mubr.f32.mxu0 0.0
    %228 = vmatmul.mubr.f32.gmra.mrb[0].mxu0 %v125
    %v229 = vpop.f32.mrb[0].mxu0
    %v230 = vadd.f32 0.0, %v229
    %v231 = vpop.f32.mrb[0].mxu0
    %v232 = vadd.f32 0.0, %v231
    %233 = vmatprep.mubr.f32.mxu0 0.0
    %234 = vmatmul.mubr.f32.gmra.mrb[0].mxu0 %v128
    %v235 = vpop.f32.mrb[0].mxu0
    %v236 = vadd.f32 0.0, %v235
    %v237 = vpop.f32.mrb[0].mxu0
    %v238 = vadd.f32 0.0, %v237
    %239 = vmatprep.mubr.f32.mxu0 0.0
    %240 = vmatmul.mubr.f32.gmra.mrb[0].mxu0 %v131
    %v241 = vpop.f32.mrb[0].mxu0
    %v242 = vadd.f32 0.0, %v241
    %v243 = vpop.f32.mrb[0].mxu0
    %v244 = vadd.f32 0.0, %v243
    %245 = vdwg.mxu0
    %246 = vmatprep.subr.mxu0 %v39
    %247 = vmatpush1.msra.mxu0 %v38
    %248 = vmatprep.subr.mxu0 0.0
    %249 = vmatpush1.msra.mxu0 0.0
    %250 = vmatprep.subr.mxu0 0.0
    %251 = vmatpush1.msra.mxu0 0.0
    %252 = vmatprep.subr.mxu0 0.0
    %253 = vmatpush1.msra.mxu0 0.0
    %254 = vmatprep.subr.mxu0 0.0
    %255 = vmatpush1.msra.mxu0 0.0
    %256 = vmatprep.subr.mxu0 0.0
    %257 = vmatpush1.msra.mxu0 0.0
    %258 = vmatprep.subr.mxu0 0.0
    %259 = vmatpush1.msra.mxu0 0.0
    %260 = vmatprep.subr.mxu0 0.0
    %261 = vmatpush1.msra.mxu0 0.0
    %262 = vmatprep.subr.mxu0 0.0
    %263 = vmatpush1.msra.mxu0 0.0
    %264 = vmatprep.subr.mxu0 0.0
    %265 = vmatpush1.msra.mxu0 0.0
    %266 = vmatprep.subr.mxu0 0.0
    %267 = vmatpush1.msra.mxu0 0.0
    %268 = vmatprep.subr.mxu0 0.0
    %269 = vmatpush1.msra.mxu0 0.0
    %270 = vmatprep.subr.mxu0 0.0
    %271 = vmatpush1.msra.mxu0 0.0
    %272 = vmatprep.subr.mxu0 0.0
    %273 = vmatpush1.msra.mxu0 0.0
    %274 = vmatprep.subr.mxu0 0.0
    %275 = vmatpush1.msra.mxu0 0.0
    %276 = vmatprep.subr.mxu0 0.0
    %277 = vmatpush1.msra.mxu0 0.0
    %278 = vmatprep.subr.mxu0 0.0
    %279 = vmatpush1.msra.mxu0 0.0
    %280 = vmatprep.subr.mxu0 0.0
    %281 = vmatpush1.msra.mxu0 0.0
    %282 = vmatprep.subr.mxu0 0.0
    %283 = vmatpush1.msra.mxu0 0.0
    %284 = vmatprep.subr.mxu0 0.0
    %285 = vmatpush1.msra.mxu0 0.0
    %286 = vmatprep.subr.mxu0 0.0
    %287 = vmatpush1.msra.mxu0 0.0
    %288 = vmatprep.subr.mxu0 0.0
    %289 = vmatpush1.msra.mxu0 0.0
    %290 = vmatprep.subr.mxu0 0.0
    %291 = vmatpush1.msra.mxu0 0.0
    %292 = vmatprep.subr.mxu0 0.0
    %293 = vmatpush1.msra.mxu0 0.0
    %294 = vmatprep.subr.mxu0 0.0
    %295 = vmatpush1.msra.mxu0 0.0
    %296 = vmatprep.subr.mxu0 0.0
    %297 = vmatpush1.msra.mxu0 0.0
    %298 = vmatprep.subr.mxu0 0.0
    %299 = vmatpush1.msra.mxu0 0.0
    %300 = vmatprep.subr.mxu0 0.0
    %301 = vmatpush1.msra.mxu0 0.0
    %302 = vmatprep.subr.mxu0 0.0
    %303 = vmatpush1.msra.mxu0 0.0
    %304 = vmatprep.subr.mxu0 0.0
    %305 = vmatpush1.msra.mxu0 0.0
    %306 = vmatprep.subr.mxu0 0.0
    %307 = vmatpush1.msra.mxu0 0.0
    %308 = vmatprep.subr.mxu0 0.0
    %309 = vmatpush1.msra.mxu0 0.0
    %310 = vmatprep.mubr.f32.mxu0 0.0
    %311 = vmatmul.mubr.f32.gmra.mrb[0].mxu0 %v110
    %v312 = vpop.f32.mrb[0].mxu0
    %v313 = vadd.f32 0.0, %v312
    %v314 = vpop.f32.mrb[0].mxu0
    %v315 = vadd.f32 0.0, %v314
    %316 = vmatprep.mubr.f32.mxu0 0.0
    %317 = vmatmul.mubr.f32.gmra.mrb[0].mxu0 %v113
    %v318 = vpop.f32.mrb[0].mxu0
    %v319 = vadd.f32 0.0, %v318
    %v320 = vpop.f32.mrb[0].mxu0
    %v321 = vadd.f32 0.0, %v320
    %322 = vmatprep.mubr.f32.mxu0 0.0
    %323 = vmatmul.mubr.f32.gmra.mrb[0].mxu0 %v116
    %v324 = vpop.f32.mrb[0].mxu0
    %v325 = vadd.f32 0.0, %v324
    %v326 = vpop.f32.mrb[0].mxu0
    %v327 = vadd.f32 0.0, %v326
    %328 = vmatprep.mubr.f32.mxu0 0.0
    %329 = vmatmul.mubr.f32.gmra.mrb[0].mxu0 %v119
    %v330 = vpop.f32.mrb[0].mxu0
    %v331 = vadd.f32 0.0, %v330
    %v332 = vpop.f32.mrb[0].mxu0
    %v333 = vadd.f32 0.0, %v332
    %334 = vmatprep.mubr.f32.mxu0 0.0
    %335 = vmatmul.mubr.f32.gmra.mrb[0].mxu0 %v122
    %v336 = vpop.f32.mrb[0].mxu0
    %v337 = vadd.f32 0.0, %v336
    %v338 = vpop.f32.mrb[0].mxu0
    %v339 = vadd.f32 0.0, %v338
    %340 = vmatprep.mubr.f32.mxu0 0.0
    %341 = vmatmul.mubr.f32.gmra.mrb[0].mxu0 %v125
    %v342 = vpop.f32.mrb[0].mxu0
    %v343 = vadd.f32 0.0, %v342
    %v344 = vpop.f32.mrb[0].mxu0
    %v345 = vadd.f32 0.0, %v344
    %346 = vmatprep.mubr.f32.mxu0 0.0
    %347 = vmatmul.mubr.f32.gmra.mrb[0].mxu0 %v128
    %v348 = vpop.f32.mrb[0].mxu0
    %v349 = vadd.f32 0.0, %v348
    %v350 = vpop.f32.mrb[0].mxu0
    %v351 = vadd.f32 0.0, %v350
    %352 = vmatprep.mubr.f32.mxu0 0.0
    %353 = vmatmul.mubr.f32.gmra.mrb[0].mxu0 %v131
    %v354 = vpop.f32.mrb[0].mxu0
    %v355 = vadd.f32 0.0, %v354
    %v356 = vpop.f32.mrb[0].mxu0
    %v357 = vadd.f32 0.0, %v356
    %358 = vdwg.mxu0
    %359 = vmatprep.subr.mxu0 %v45
    %360 = vmatpush1.msra.mxu0 %v44
    %361 = vmatprep.subr.mxu0 %v49
    %362 = vmatpush1.msra.mxu0 %v48
    %363 = vmatprep.subr.mxu0 %v53
    %364 = vmatpush1.msra.mxu0 %v52
    %365 = vmatprep.subr.mxu0 %v57
    %366 = vmatpush1.msra.mxu0 %v56
    %367 = vmatprep.subr.mxu0 %v61
    %368 = vmatpush1.msra.mxu0 %v60
    %369 = vmatprep.subr.mxu0 %v65
    %370 = vmatpush1.msra.mxu0 %v64
    %371 = vmatprep.subr.mxu0 %v69
    %372 = vmatpush1.msra.mxu0 %v68
    %373 = vmatprep.subr.mxu0 %v73
    %374 = vmatpush1.msra.mxu0 %v72
    %375 = vmatprep.subr.mxu0 %v77
    %376 = vmatpush1.msra.mxu0 %v76
    %377 = vmatprep.subr.mxu0 %v81
    %378 = vmatpush1.msra.mxu0 %v80
    %379 = vmatprep.subr.mxu0 %v85
    %380 = vmatpush1.msra.mxu0 %v84
    %381 = vmatprep.subr.mxu0 %v89
    %382 = vmatpush1.msra.mxu0 %v88
    %383 = vmatprep.subr.mxu0 %v93
    %384 = vmatpush1.msra.mxu0 %v92
    %385 = vmatprep.subr.mxu0 %v97
    %386 = vmatpush1.msra.mxu0 %v96
    %387 = vmatprep.subr.mxu0 %v101
    %388 = vmatpush1.msra.mxu0 %v100
    %389 = vmatprep.subr.mxu0 %v105
    %390 = vmatpush1.msra.mxu0 %v104
    %391 = vmatprep.subr.mxu0 0.0
    %392 = vmatpush1.msra.mxu0 0.0
    %393 = vmatprep.subr.mxu0 0.0
    %394 = vmatpush1.msra.mxu0 0.0
    %395 = vmatprep.subr.mxu0 0.0
    %396 = vmatpush1.msra.mxu0 0.0
    %397 = vmatprep.subr.mxu0 0.0
    %398 = vmatpush1.msra.mxu0 0.0
    %399 = vmatprep.subr.mxu0 0.0
    %400 = vmatpush1.msra.mxu0 0.0
    %401 = vmatprep.subr.mxu0 0.0
    %402 = vmatpush1.msra.mxu0 0.0
    %403 = vmatprep.subr.mxu0 0.0
    %404 = vmatpush1.msra.mxu0 0.0
    %405 = vmatprep.subr.mxu0 0.0
    %406 = vmatpush1.msra.mxu0 0.0
    %407 = vmatprep.subr.mxu0 0.0
    %408 = vmatpush1.msra.mxu0 0.0
    %409 = vmatprep.subr.mxu0 0.0
    %410 = vmatpush1.msra.mxu0 0.0
    %411 = vmatprep.subr.mxu0 0.0
    %412 = vmatpush1.msra.mxu0 0.0
    %413 = vmatprep.subr.mxu0 0.0
    %414 = vmatpush1.msra.mxu0 0.0
    %415 = vmatprep.subr.mxu0 0.0
    %416 = vmatpush1.msra.mxu0 0.0
    %417 = vmatprep.subr.mxu0 0.0
    %418 = vmatpush1.msra.mxu0 0.0
    %419 = vmatprep.subr.mxu0 0.0
    %420 = vmatpush1.msra.mxu0 0.0
    %421 = vmatprep.subr.mxu0 0.0
    %422 = vmatpush1.msra.mxu0 0.0
    %423 = vmatprep.mubr.f32.mxu0 0.0
    %424 = vmatmul.mubr.f32.gmra.mrb[0].mxu0 0.0
    %v425 = vpop.f32.mrb[0].mxu0
    %v426 = vadd.f32 0.0, %v425
    %v427 = vpop.f32.mrb[0].mxu0
    %v428 = vadd.f32 0.0, %v427
    %429 = vdwg.mxu0
    %430 = vmatprep.subr.mxu0 %v47
    %431 = vmatpush1.msra.mxu0 %v46
    %432 = vmatprep.subr.mxu0 %v51
    %433 = vmatpush1.msra.mxu0 %v50
    %434 = vmatprep.subr.mxu0 %v55
    %435 = vmatpush1.msra.mxu0 %v54
    %436 = vmatprep.subr.mxu0 %v59
    %437 = vmatpush1.msra.mxu0 %v58
    %438 = vmatprep.subr.mxu0 %v63
    %439 = vmatpush1.msra.mxu0 %v62
    %440 = vmatprep.subr.mxu0 %v67
    %441 = vmatpush1.msra.mxu0 %v66
    %442 = vmatprep.subr.mxu0 %v71
    %443 = vmatpush1.msra.mxu0 %v70
    %444 = vmatprep.subr.mxu0 %v75
    %445 = vmatpush1.msra.mxu0 %v74
    %446 = vmatprep.subr.mxu0 %v79
    %447 = vmatpush1.msra.mxu0 %v78
    %448 = vmatprep.subr.mxu0 %v83
    %449 = vmatpush1.msra.mxu0 %v82
    %450 = vmatprep.subr.mxu0 %v87
    %451 = vmatpush1.msra.mxu0 %v86
    %452 = vmatprep.subr.mxu0 %v91
    %453 = vmatpush1.msra.mxu0 %v90
    %454 = vmatprep.subr.mxu0 %v95
    %455 = vmatpush1.msra.mxu0 %v94
    %456 = vmatprep.subr.mxu0 %v99
    %457 = vmatpush1.msra.mxu0 %v98
    %458 = vmatprep.subr.mxu0 %v103
    %459 = vmatpush1.msra.mxu0 %v102
    %460 = vmatprep.subr.mxu0 %v107
    %461 = vmatpush1.msra.mxu0 %v106
    %462 = vmatprep.subr.mxu0 0.0
    %463 = vmatpush1.msra.mxu0 0.0
    %464 = vmatprep.subr.mxu0 0.0
    %465 = vmatpush1.msra.mxu0 0.0
    %466 = vmatprep.subr.mxu0 0.0
    %467 = vmatpush1.msra.mxu0 0.0
    %468 = vmatprep.subr.mxu0 0.0
    %469 = vmatpush1.msra.mxu0 0.0
    %470 = vmatprep.subr.mxu0 0.0
    %471 = vmatpush1.msra.mxu0 0.0
    %472 = vmatprep.subr.mxu0 0.0
    %473 = vmatpush1.msra.mxu0 0.0
    %474 = vmatprep.subr.mxu0 0.0
    %475 = vmatpush1.msra.mxu0 0.0
    %476 = vmatprep.subr.mxu0 0.0
    %477 = vmatpush1.msra.mxu0 0.0
    %478 = vmatprep.subr.mxu0 0.0
    %479 = vmatpush1.msra.mxu0 0.0
    %480 = vmatprep.subr.mxu0 0.0
    %481 = vmatpush1.msra.mxu0 0.0
    %482 = vmatprep.subr.mxu0 0.0
    %483 = vmatpush1.msra.mxu0 0.0
    %484 = vmatprep.subr.mxu0 0.0
    %485 = vmatpush1.msra.mxu0 0.0
    %486 = vmatprep.subr.mxu0 0.0
    %487 = vmatpush1.msra.mxu0 0.0
    %488 = vmatprep.subr.mxu0 0.0
    %489 = vmatpush1.msra.mxu0 0.0
    %490 = vmatprep.subr.mxu0 0.0
    %491 = vmatpush1.msra.mxu0 0.0
    %492 = vmatprep.subr.mxu0 0.0
    %493 = vmatpush1.msra.mxu0 0.0
    %494 = vmatprep.mubr.f32.mxu0 0.0
    %495 = vmatmul.mubr.f32.gmra.mrb[0].mxu0 0.0
    %v496 = vpop.f32.mrb[0].mxu0
    %v497 = vadd.f32 0.0, %v496
    %v498 = vpop.f32.mrb[0].mxu0
    %v499 = vadd.f32 0.0, %v498
    %500 = vdwg.mxu0
    %v501 = vadd.f32 %v200, %v426
    %v502 = vadd.f32 %v202, %v428
    %v503 = vadd.f32 %v313, %v497
    %v504 = vadd.f32 %v315, %v499
    %v505 = vmul.f32 %v501, 0.5
    %v506 = vmul.f32 %v502, 0.5
    %v507 = vmul.f32 %v503, 0.5
    %v508 = vtanh.pop %v505
    %v509 = vtanh.pop %v506
    %v510 = vtanh.pop %v507
    %v511 = vmul.f32 %v508, 0.5
    %v512 = vmul.f32 %v509, 0.5
    %v513 = vmul.f32 %v510, 0.5
    %v514 = vadd.f32 %v511, 0.5
    %v515 = vadd.f32 %v512, 0.5
    %v516 = vadd.f32 %v513, 0.5
    %v517 = vtanh.pop %v504
    %v518 = vmul.f32 %v515, 0.0
    %v519 = vmul.f32 %v514, %v517
    %v520 = vadd.f32 %v518, %v519
    %v521 = vtanh.pop %v520
    %v522 = vmul.f32 %v516, %v521
    %523 = vmatprep.subr.mxu0 %v45
    %524 = vmatpush1.msra.mxu0 %v44
    %525 = vmatprep.subr.mxu0 %v49
    %526 = vmatpush1.msra.mxu0 %v48
    %527 = vmatprep.subr.mxu0 %v53
    %528 = vmatpush1.msra.mxu0 %v52
    %529 = vmatprep.subr.mxu0 %v57
    %530 = vmatpush1.msra.mxu0 %v56
    %531 = vmatprep.subr.mxu0 %v61
    %532 = vmatpush1.msra.mxu0 %v60
    %533 = vmatprep.subr.mxu0 %v65
    %534 = vmatpush1.msra.mxu0 %v64
    %535 = vmatprep.subr.mxu0 %v69
    %536 = vmatpush1.msra.mxu0 %v68
    %537 = vmatprep.subr.mxu0 %v73
    %538 = vmatpush1.msra.mxu0 %v72
    %539 = vmatprep.subr.mxu0 %v77
    %540 = vmatpush1.msra.mxu0 %v76
    %541 = vmatprep.subr.mxu0 %v81
    %542 = vmatpush1.msra.mxu0 %v80
    %543 = vmatprep.subr.mxu0 %v85
    %544 = vmatpush1.msra.mxu0 %v84
    %545 = vmatprep.subr.mxu0 %v89
    %546 = vmatpush1.msra.mxu0 %v88
    %547 = vmatprep.subr.mxu0 %v93
    %548 = vmatpush1.msra.mxu0 %v92
    %549 = vmatprep.subr.mxu0 %v97
    %550 = vmatpush1.msra.mxu0 %v96
    %551 = vmatprep.subr.mxu0 %v101
    %552 = vmatpush1.msra.mxu0 %v100
    %553 = vmatprep.subr.mxu0 %v105
    %554 = vmatpush1.msra.mxu0 %v104
    %555 = vmatprep.subr.mxu0 0.0
    %556 = vmatpush1.msra.mxu0 0.0
    %557 = vmatprep.subr.mxu0 0.0
    %558 = vmatpush1.msra.mxu0 0.0
    %559 = vmatprep.subr.mxu0 0.0
    %560 = vmatpush1.msra.mxu0 0.0
    %561 = vmatprep.subr.mxu0 0.0
    %562 = vmatpush1.msra.mxu0 0.0
    %563 = vmatprep.subr.mxu0 0.0
    %564 = vmatpush1.msra.mxu0 0.0
    %565 = vmatprep.subr.mxu0 0.0
    %566 = vmatpush1.msra.mxu0 0.0
    %567 = vmatprep.subr.mxu0 0.0
    %568 = vmatpush1.msra.mxu0 0.0
    %569 = vmatprep.subr.mxu0 0.0
    %570 = vmatpush1.msra.mxu0 0.0
    %571 = vmatprep.subr.mxu0 0.0
    %572 = vmatpush1.msra.mxu0 0.0
    %573 = vmatprep.subr.mxu0 0.0
    %574 = vmatpush1.msra.mxu0 0.0
    %575 = vmatprep.subr.mxu0 0.0
    %576 = vmatpush1.msra.mxu0 0.0
    %577 = vmatprep.subr.mxu0 0.0
    %578 = vmatpush1.msra.mxu0 0.0
    %579 = vmatprep.subr.mxu0 0.0
    %580 = vmatpush1.msra.mxu0 0.0
    %581 = vmatprep.subr.mxu0 0.0
    %582 = vmatpush1.msra.mxu0 0.0
    %583 = vmatprep.subr.mxu0 0.0
    %584 = vmatpush1.msra.mxu0 0.0
    %585 = vmatprep.subr.mxu0 0.0
    %586 = vmatpush1.msra.mxu0 0.0
    %587 = vmatprep.mubr.f32.mxu0 0.0
    %588 = vmatmul.mubr.f32.gmra.mrb[0].mxu0 %v522
    %v589 = vpop.f32.mrb[0].mxu0
    %v590 = vadd.f32 0.0, %v589
    %v591 = vpop.f32.mrb[0].mxu0
    %v592 = vadd.f32 0.0, %v591
    %593 = vdwg.mxu0
    %594 = vmatprep.subr.mxu0 %v47
    %595 = vmatpush1.msra.mxu0 %v46
    %596 = vmatprep.subr.mxu0 %v51
    %597 = vmatpush1.msra.mxu0 %v50
    %598 = vmatprep.subr.mxu0 %v55
    %599 = vmatpush1.msra.mxu0 %v54
    %600 = vmatprep.subr.mxu0 %v59
    %601 = vmatpush1.msra.mxu0 %v58
    %602 = vmatprep.subr.mxu0 %v63
    %603 = vmatpush1.msra.mxu0 %v62
    %604 = vmatprep.subr.mxu0 %v67
    %605 = vmatpush1.msra.mxu0 %v66
    %606 = vmatprep.subr.mxu0 %v71
    %607 = vmatpush1.msra.mxu0 %v70
    %608 = vmatprep.subr.mxu0 %v75
    %609 = vmatpush1.msra.mxu0 %v74
    %610 = vmatprep.subr.mxu0 %v79
    %611 = vmatpush1.msra.mxu0 %v78
    %612 = vmatprep.subr.mxu0 %v83
    %613 = vmatpush1.msra.mxu0 %v82
    %614 = vmatprep.subr.mxu0 %v87
    %615 = vmatpush1.msra.mxu0 %v86
    %616 = vmatprep.subr.mxu0 %v91
    %617 = vmatpush1.msra.mxu0 %v90
    %618 = vmatprep.subr.mxu0 %v95
    %619 = vmatpush1.msra.mxu0 %v94
    %620 = vmatprep.subr.mxu0 %v99
    %621 = vmatpush1.msra.mxu0 %v98
    %622 = vmatprep.subr.mxu0 %v103
    %623 = vmatpush1.msra.mxu0 %v102
    %624 = vmatprep.subr.mxu0 %v107
    %625 = vmatpush1.msra.mxu0 %v106
    %626 = vmatprep.subr.mxu0 0.0
    %627 = vmatpush1.msra.mxu0 0.0
    %628 = vmatprep.subr.mxu0 0.0
    %629 = vmatpush1.msra.mxu0 0.0
    %630 = vmatprep.subr.mxu0 0.0
    %631 = vmatpush1.msra.mxu0 0.0
    %632 = vmatprep.subr.mxu0 0.0
    %633 = vmatpush1.msra.mxu0 0.0
    %634 = vmatprep.subr.mxu0 0.0
    %635 = vmatpush1.msra.mxu0 0.0
    %636 = vmatprep.subr.mxu0 0.0
    %637 = vmatpush1.msra.mxu0 0.0
    %638 = vmatprep.subr.mxu0 0.0
    %639 = vmatpush1.msra.mxu0 0.0
    %640 = vmatprep.subr.mxu0 0.0
    %641 = vmatpush1.msra.mxu0 0.0
    %642 = vmatprep.subr.mxu0 0.0
    %643 = vmatpush1.msra.mxu0 0.0
    %644 = vmatprep.subr.mxu0 0.0
    %645 = vmatpush1.msra.mxu0 0.0
    %646 = vmatprep.subr.mxu0 0.0
    %647 = vmatpush1.msra.mxu0 0.0
    %648 = vmatprep.subr.mxu0 0.0
    %649 = vmatpush1.msra.mxu0 0.0
    %650 = vmatprep.subr.mxu0 0.0
    %651 = vmatpush1.msra.mxu0 0.0
    %652 = vmatprep.subr.mxu0 0.0
    %653 = vmatpush1.msra.mxu0 0.0
    %654 = vmatprep.subr.mxu0 0.0
    %655 = vmatpush1.msra.mxu0 0.0
    %656 = vmatprep.subr.mxu0 0.0
    %657 = vmatpush1.msra.mxu0 0.0
    %658 = vmatprep.mubr.f32.mxu0 0.0
    %659 = vmatmul.mubr.f32.gmra.mrb[0].mxu0 %v522
    %v660 = vpop.f32.mrb[0].mxu0
    %v661 = vadd.f32 0.0, %v660
    %v662 = vpop.f32.mrb[0].mxu0
    %v663 = vadd.f32 0.0, %v662
    %664 = vdwg.mxu0
    %v665 = vadd.f32 %v206, %v590
    %v666 = vadd.f32 %v208, %v592
    %v667 = vadd.f32 %v319, %v661
    %v668 = vadd.f32 %v321, %v663
    %v669 = vmul.f32 %v665, 0.5
    %v670 = vmul.f32 %v666, 0.5
    %v671 = vmul.f32 %v667, 0.5
    %v672 = vtanh.pop %v669
    %v673 = vtanh.pop %v670
    %v674 = vtanh.pop %v671
    %v675 = vmul.f32 %v672, 0.5
    %v676 = vmul.f32 %v673, 0.5
    %v677 = vmul.f32 %v674, 0.5
    %v678 = vadd.f32 %v675, 0.5
    %v679 = vadd.f32 %v676, 0.5
    %v680 = vadd.f32 %v677, 0.5
    %v681 = vtanh.pop %v668
    %v682 = vmul.f32 %v679, %v520
    %v683 = vmul.f32 %v678, %v681
    %v684 = vadd.f32 %v682, %v683
    %v685 = vtanh.pop %v684
    %v686 = vmul.f32 %v680, %v685
    %687 = vmatprep.subr.mxu0 %v45
    %688 = vmatpush1.msra.mxu0 %v44
    %689 = vmatprep.subr.mxu0 %v49
    %690 = vmatpush1.msra.mxu0 %v48
    %691 = vmatprep.subr.mxu0 %v53
    %692 = vmatpush1.msra.mxu0 %v52
    %693 = vmatprep.subr.mxu0 %v57
    %694 = vmatpush1.msra.mxu0 %v56
    %695 = vmatprep.subr.mxu0 %v61
    %696 = vmatpush1.msra.mxu0 %v60
    %697 = vmatprep.subr.mxu0 %v65
    %698 = vmatpush1.msra.mxu0 %v64
    %699 = vmatprep.subr.mxu0 %v69
    %700 = vmatpush1.msra.mxu0 %v68
    %701 = vmatprep.subr.mxu0 %v73
    %702 = vmatpush1.msra.mxu0 %v72
    %703 = vmatprep.subr.mxu0 %v77
    %704 = vmatpush1.msra.mxu0 %v76
    %705 = vmatprep.subr.mxu0 %v81
    %706 = vmatpush1.msra.mxu0 %v80
    %707 = vmatprep.subr.mxu0 %v85
    %708 = vmatpush1.msra.mxu0 %v84
    %709 = vmatprep.subr.mxu0 %v89
    %710 = vmatpush1.msra.mxu0 %v88
    %711 = vmatprep.subr.mxu0 %v93
    %712 = vmatpush1.msra.mxu0 %v92
    %713 = vmatprep.subr.mxu0 %v97
    %714 = vmatpush1.msra.mxu0 %v96
    %715 = vmatprep.subr.mxu0 %v101
    %716 = vmatpush1.msra.mxu0 %v100
    %717 = vmatprep.subr.mxu0 %v105
    %718 = vmatpush1.msra.mxu0 %v104
    %719 = vmatprep.subr.mxu0 0.0
    %720 = vmatpush1.msra.mxu0 0.0
    %721 = vmatprep.subr.mxu0 0.0
    %722 = vmatpush1.msra.mxu0 0.0
    %723 = vmatprep.subr.mxu0 0.0
    %724 = vmatpush1.msra.mxu0 0.0
    %725 = vmatprep.subr.mxu0 0.0
    %726 = vmatpush1.msra.mxu0 0.0
    %727 = vmatprep.subr.mxu0 0.0
    %728 = vmatpush1.msra.mxu0 0.0
    %729 = vmatprep.subr.mxu0 0.0
    %730 = vmatpush1.msra.mxu0 0.0
    %731 = vmatprep.subr.mxu0 0.0
    %732 = vmatpush1.msra.mxu0 0.0
    %733 = vmatprep.subr.mxu0 0.0
    %734 = vmatpush1.msra.mxu0 0.0
    %735 = vmatprep.subr.mxu0 0.0
    %736 = vmatpush1.msra.mxu0 0.0
    %737 = vmatprep.subr.mxu0 0.0
    %738 = vmatpush1.msra.mxu0 0.0
    %739 = vmatprep.subr.mxu0 0.0
    %740 = vmatpush1.msra.mxu0 0.0
    %741 = vmatprep.subr.mxu0 0.0
    %742 = vmatpush1.msra.mxu0 0.0
    %743 = vmatprep.subr.mxu0 0.0
    %744 = vmatpush1.msra.mxu0 0.0
    %745 = vmatprep.subr.mxu0 0.0
    %746 = vmatpush1.msra.mxu0 0.0
    %747 = vmatprep.subr.mxu0 0.0
    %748 = vmatpush1.msra.mxu0 0.0
    %749 = vmatprep.subr.mxu0 0.0
    %750 = vmatpush1.msra.mxu0 0.0
    %751 = vmatprep.mubr.f32.mxu0 0.0
    %752 = vmatmul.mubr.f32.gmra.mrb[0].mxu0 %v686
    %v753 = vpop.f32.mrb[0].mxu0
    %v754 = vadd.f32 0.0, %v753
    %v755 = vpop.f32.mrb[0].mxu0
    %v756 = vadd.f32 0.0, %v755
    %757 = vdwg.mxu0
    %758 = vmatprep.subr.mxu0 %v47
    %759 = vmatpush1.msra.mxu0 %v46
    %760 = vmatprep.subr.mxu0 %v51
    %761 = vmatpush1.msra.mxu0 %v50
    %762 = vmatprep.subr.mxu0 %v55
    %763 = vmatpush1.msra.mxu0 %v54
    %764 = vmatprep.subr.mxu0 %v59
    %765 = vmatpush1.msra.mxu0 %v58
    %766 = vmatprep.subr.mxu0 %v63
    %767 = vmatpush1.msra.mxu0 %v62
    %768 = vmatprep.subr.mxu0 %v67
    %769 = vmatpush1.msra.mxu0 %v66
    %770 = vmatprep.subr.mxu0 %v71
    %771 = vmatpush1.msra.mxu0 %v70
    %772 = vmatprep.subr.mxu0 %v75
    %773 = vmatpush1.msra.mxu0 %v74
    %774 = vmatprep.subr.mxu0 %v79
    %775 = vmatpush1.msra.mxu0 %v78
    %776 = vmatprep.subr.mxu0 %v83
    %777 = vmatpush1.msra.mxu0 %v82
    %778 = vmatprep.subr.mxu0 %v87
    %779 = vmatpush1.msra.mxu0 %v86
    %780 = vmatprep.subr.mxu0 %v91
    %781 = vmatpush1.msra.mxu0 %v90
    %782 = vmatprep.subr.mxu0 %v95
    %783 = vmatpush1.msra.mxu0 %v94
    %784 = vmatprep.subr.mxu0 %v99
    %785 = vmatpush1.msra.mxu0 %v98
    %786 = vmatprep.subr.mxu0 %v103
    %787 = vmatpush1.msra.mxu0 %v102
    %788 = vmatprep.subr.mxu0 %v107
    %789 = vmatpush1.msra.mxu0 %v106
    %790 = vmatprep.subr.mxu0 0.0
    %791 = vmatpush1.msra.mxu0 0.0
    %792 = vmatprep.subr.mxu0 0.0
    %793 = vmatpush1.msra.mxu0 0.0
    %794 = vmatprep.subr.mxu0 0.0
    %795 = vmatpush1.msra.mxu0 0.0
    %796 = vmatprep.subr.mxu0 0.0
    %797 = vmatpush1.msra.mxu0 0.0
    %798 = vmatprep.subr.mxu0 0.0
    %799 = vmatpush1.msra.mxu0 0.0
    %800 = vmatprep.subr.mxu0 0.0
    %801 = vmatpush1.msra.mxu0 0.0
    %802 = vmatprep.subr.mxu0 0.0
    %803 = vmatpush1.msra.mxu0 0.0
    %804 = vmatprep.subr.mxu0 0.0
    %805 = vmatpush1.msra.mxu0 0.0
    %806 = vmatprep.subr.mxu0 0.0
    %807 = vmatpush1.msra.mxu0 0.0
    %808 = vmatprep.subr.mxu0 0.0
    %809 = vmatpush1.msra.mxu0 0.0
    %810 = vmatprep.subr.mxu0 0.0
    %811 = vmatpush1.msra.mxu0 0.0
    %812 = vmatprep.subr.mxu0 0.0
    %813 = vmatpush1.msra.mxu0 0.0
    %814 = vmatprep.subr.mxu0 0.0
    %815 = vmatpush1.msra.mxu0 0.0
    %816 = vmatprep.subr.mxu0 0.0
    %817 = vmatpush1.msra.mxu0 0.0
    %818 = vmatprep.subr.mxu0 0.0
    %819 = vmatpush1.msra.mxu0 0.0
    %820 = vmatprep.subr.mxu0 0.0
    %821 = vmatpush1.msra.mxu0 0.0
    %822 = vmatprep.mubr.f32.mxu0 0.0
    %823 = vmatmul.mubr.f32.gmra.mrb[0].mxu0 %v686
    %v824 = vpop.f32.mrb[0].mxu0
    %v825 = vadd.f32 0.0, %v824
    %v826 = vpop.f32.mrb[0].mxu0
    %v827 = vadd.f32 0.0, %v826
    %828 = vdwg.mxu0
    %v829 = vadd.f32 %v212, %v754
    %v830 = vadd.f32 %v214, %v756
    %v831 = vadd.f32 %v325, %v825
    %v832 = vadd.f32 %v327, %v827
    %v833 = vmul.f32 %v829, 0.5
    %v834 = vmul.f32 %v830, 0.5
    %v835 = vmul.f32 %v831, 0.5
    %v836 = vtanh.pop %v833
    %v837 = vtanh.pop %v834
    %v838 = vtanh.pop %v835
    %v839 = vmul.f32 %v836, 0.5
    %v840 = vmul.f32 %v837, 0.5
    %v841 = vmul.f32 %v838, 0.5
    %v842 = vadd.f32 %v839, 0.5
    %v843 = vadd.f32 %v840, 0.5
    %v844 = vadd.f32 %v841, 0.5
    %v845 = vtanh.pop %v832
    %v846 = vmul.f32 %v843, %v684
    %v847 = vmul.f32 %v842, %v845
    %v848 = vadd.f32 %v846, %v847
    %v849 = vtanh.pop %v848
    %v850 = vmul.f32 %v844, %v849
    %851 = vmatprep.subr.mxu0 %v45
    %852 = vmatpush1.msra.mxu0 %v44
    %853 = vmatprep.subr.mxu0 %v49
    %854 = vmatpush1.msra.mxu0 %v48
    %855 = vmatprep.subr.mxu0 %v53
    %856 = vmatpush1.msra.mxu0 %v52
    %857 = vmatprep.subr.mxu0 %v57
    %858 = vmatpush1.msra.mxu0 %v56
    %859 = vmatprep.subr.mxu0 %v61
    %860 = vmatpush1.msra.mxu0 %v60
    %861 = vmatprep.subr.mxu0 %v65
    %862 = vmatpush1.msra.mxu0 %v64
    %863 = vmatprep.subr.mxu0 %v69
    %864 = vmatpush1.msra.mxu0 %v68
    %865 = vmatprep.subr.mxu0 %v73
    %866 = vmatpush1.msra.mxu0 %v72
    %867 = vmatprep.subr.mxu0 %v77
    %868 = vmatpush1.msra.mxu0 %v76
    %869 = vmatprep.subr.mxu0 %v81
    %870 = vmatpush1.msra.mxu0 %v80
    %871 = vmatprep.subr.mxu0 %v85
    %872 = vmatpush1.msra.mxu0 %v84
    %873 = vmatprep.subr.mxu0 %v89
    %874 = vmatpush1.msra.mxu0 %v88
    %875 = vmatprep.subr.mxu0 %v93
    %876 = vmatpush1.msra.mxu0 %v92
    %877 = vmatprep.subr.mxu0 %v97
    %878 = vmatpush1.msra.mxu0 %v96
    %879 = vmatprep.subr.mxu0 %v101
    %880 = vmatpush1.msra.mxu0 %v100
    %881 = vmatprep.subr.mxu0 %v105
    %882 = vmatpush1.msra.mxu0 %v104
    %883 = vmatprep.subr.mxu0 0.0
    %884 = vmatpush1.msra.mxu0 0.0
    %885 = vmatprep.subr.mxu0 0.0
    %886 = vmatpush1.msra.mxu0 0.0
    %887 = vmatprep.subr.mxu0 0.0
    %888 = vmatpush1.msra.mxu0 0.0
    %889 = vmatprep.subr.mxu0 0.0
    %890 = vmatpush1.msra.mxu0 0.0
    %891 = vmatprep.subr.mxu0 0.0
    %892 = vmatpush1.msra.mxu0 0.0
    %893 = vmatprep.subr.mxu0 0.0
    %894 = vmatpush1.msra.mxu0 0.0
    %895 = vmatprep.subr.mxu0 0.0
    %896 = vmatpush1.msra.mxu0 0.0
    %897 = vmatprep.subr.mxu0 0.0
    %898 = vmatpush1.msra.mxu0 0.0
    %899 = vmatprep.subr.mxu0 0.0
    %900 = vmatpush1.msra.mxu0 0.0
    %901 = vmatprep.subr.mxu0 0.0
    %902 = vmatpush1.msra.mxu0 0.0
    %903 = vmatprep.subr.mxu0 0.0
    %904 = vmatpush1.msra.mxu0 0.0
    %905 = vmatprep.subr.mxu0 0.0
    %906 = vmatpush1.msra.mxu0 0.0
    %907 = vmatprep.subr.mxu0 0.0
    %908 = vmatpush1.msra.mxu0 0.0
    %909 = vmatprep.subr.mxu0 0.0
    %910 = vmatpush1.msra.mxu0 0.0
    %911 = vmatprep.subr.mxu0 0.0
    %912 = vmatpush1.msra.mxu0 0.0
    %913 = vmatprep.subr.mxu0 0.0
    %914 = vmatpush1.msra.mxu0 0.0
    %915 = vmatprep.mubr.f32.mxu0 0.0
    %916 = vmatmul.mubr.f32.gmra.mrb[0].mxu0 %v850
    %v917 = vpop.f32.mrb[0].mxu0
    %v918 = vadd.f32 0.0, %v917
    %v919 = vpop.f32.mrb[0].mxu0
    %v920 = vadd.f32 0.0, %v919
    %921 = vdwg.mxu0
    %922 = vmatprep.subr.mxu0 %v47
    %923 = vmatpush1.msra.mxu0 %v46
    %924 = vmatprep.subr.mxu0 %v51
    %925 = vmatpush1.msra.mxu0 %v50
    %926 = vmatprep.subr.mxu0 %v55
    %927 = vmatpush1.msra.mxu0 %v54
    %928 = vmatprep.subr.mxu0 %v59
    %929 = vmatpush1.msra.mxu0 %v58
    %930 = vmatprep.subr.mxu0 %v63
    %931 = vmatpush1.msra.mxu0 %v62
    %932 = vmatprep.subr.mxu0 %v67
    %933 = vmatpush1.msra.mxu0 %v66
    %934 = vmatprep.subr.mxu0 %v71
    %935 = vmatpush1.msra.mxu0 %v70
    %936 = vmatprep.subr.mxu0 %v75
    %937 = vmatpush1.msra.mxu0 %v74
    %938 = vmatprep.subr.mxu0 %v79
    %939 = vmatpush1.msra.mxu0 %v78
    %940 = vmatprep.subr.mxu0 %v83
    %941 = vmatpush1.msra.mxu0 %v82
    %942 = vmatprep.subr.mxu0 %v87
    %943 = vmatpush1.msra.mxu0 %v86
    %944 = vmatprep.subr.mxu0 %v91
    %945 = vmatpush1.msra.mxu0 %v90
    %946 = vmatprep.subr.mxu0 %v95
    %947 = vmatpush1.msra.mxu0 %v94
    %948 = vmatprep.subr.mxu0 %v99
    %949 = vmatpush1.msra.mxu0 %v98
    %950 = vmatprep.subr.mxu0 %v103
    %951 = vmatpush1.msra.mxu0 %v102
    %952 = vmatprep.subr.mxu0 %v107
    %953 = vmatpush1.msra.mxu0 %v106
    %954 = vmatprep.subr.mxu0 0.0
    %955 = vmatpush1.msra.mxu0 0.0
    %956 = vmatprep.subr.mxu0 0.0
    %957 = vmatpush1.msra.mxu0 0.0
    %958 = vmatprep.subr.mxu0 0.0
    %959 = vmatpush1.msra.mxu0 0.0
    %960 = vmatprep.subr.mxu0 0.0
    %961 = vmatpush1.msra.mxu0 0.0
    %962 = vmatprep.subr.mxu0 0.0
    %963 = vmatpush1.msra.mxu0 0.0
    %964 = vmatprep.subr.mxu0 0.0
    %965 = vmatpush1.msra.mxu0 0.0
    %966 = vmatprep.subr.mxu0 0.0
    %967 = vmatpush1.msra.mxu0 0.0
    %968 = vmatprep.subr.mxu0 0.0
    %969 = vmatpush1.msra.mxu0 0.0
    %970 = vmatprep.subr.mxu0 0.0
    %971 = vmatpush1.msra.mxu0 0.0
    %972 = vmatprep.subr.mxu0 0.0
    %973 = vmatpush1.msra.mxu0 0.0
    %974 = vmatprep.subr.mxu0 0.0
    %975 = vmatpush1.msra.mxu0 0.0
    %976 = vmatprep.subr.mxu0 0.0
    %977 = vmatpush1.msra.mxu0 0.0
    %978 = vmatprep.subr.mxu0 0.0
    %979 = vmatpush1.msra.mxu0 0.0
    %980 = vmatprep.subr.mxu0 0.0
    %981 = vmatpush1.msra.mxu0 0.0
    %982 = vmatprep.subr.mxu0 0.0
    %983 = vmatpush1.msra.mxu0 0.0
    %984 = vmatprep.subr.mxu0 0.0
    %985 = vmatpush1.msra.mxu0 0.0
    %986 = vmatprep.mubr.f32.mxu0 0.0
    %987 = vmatmul.mubr.f32.gmra.mrb[0].mxu0 %v850
    %v988 = vpop.f32.mrb[0].mxu0
    %v989 = vadd.f32 0.0, %v988
    %v990 = vpop.f32.mrb[0].mxu0
    %v991 = vadd.f32 0.0, %v990
    %992 = vdwg.mxu0
    %v993 = vadd.f32 %v218, %v918
    %v994 = vadd.f32 %v220, %v920
    %v995 = vadd.f32 %v331, %v989
    %v996 = vadd.f32 %v333, %v991
    %v997 = vmul.f32 %v993, 0.5
    %v998 = vmul.f32 %v994, 0.5
    %v999 = vmul.f32 %v995, 0.5
    %v1000 = vtanh.pop %v997
    %v1001 = vtanh.pop %v998
    %v1002 = vtanh.pop %v999
    %v1003 = vmul.f32 %v1000, 0.5
    %v1004 = vmul.f32 %v1001, 0.5
    %v1005 = vmul.f32 %v1002, 0.5
    %v1006 = vadd.f32 %v1003, 0.5
    %v1007 = vadd.f32 %v1004, 0.5
    %v1008 = vadd.f32 %v1005, 0.5
    %v1009 = vtanh.pop %v996
    %v1010 = vmul.f32 %v1007, %v848
    %v1011 = vmul.f32 %v1006, %v1009
    %v1012 = vadd.f32 %v1010, %v1011
    %v1013 = vtanh.pop %v1012
    %v1014 = vmul.f32 %v1008, %v1013
    %1015 = vmatprep.subr.mxu0 %v45
    %1016 = vmatpush1.msra.mxu0 %v44
    %1017 = vmatprep.subr.mxu0 %v49
    %1018 = vmatpush1.msra.mxu0 %v48
    %1019 = vmatprep.subr.mxu0 %v53
    %1020 = vmatpush1.msra.mxu0 %v52
    %1021 = vmatprep.subr.mxu0 %v57
    %1022 = vmatpush1.msra.mxu0 %v56
    %1023 = vmatprep.subr.mxu0 %v61
    %1024 = vmatpush1.msra.mxu0 %v60
    %1025 = vmatprep.subr.mxu0 %v65
    %1026 = vmatpush1.msra.mxu0 %v64
    %1027 = vmatprep.subr.mxu0 %v69
    %1028 = vmatpush1.msra.mxu0 %v68
    %1029 = vmatprep.subr.mxu0 %v73
    %1030 = vmatpush1.msra.mxu0 %v72
    %1031 = vmatprep.subr.mxu0 %v77
    %1032 = vmatpush1.msra.mxu0 %v76
    %1033 = vmatprep.subr.mxu0 %v81
    %1034 = vmatpush1.msra.mxu0 %v80
    %1035 = vmatprep.subr.mxu0 %v85
    %1036 = vmatpush1.msra.mxu0 %v84
    %1037 = vmatprep.subr.mxu0 %v89
    %1038 = vmatpush1.msra.mxu0 %v88
    %1039 = vmatprep.subr.mxu0 %v93
    %1040 = vmatpush1.msra.mxu0 %v92
    %1041 = vmatprep.subr.mxu0 %v97
    %1042 = vmatpush1.msra.mxu0 %v96
    %1043 = vmatprep.subr.mxu0 %v101
    %1044 = vmatpush1.msra.mxu0 %v100
    %1045 = vmatprep.subr.mxu0 %v105
    %1046 = vmatpush1.msra.mxu0 %v104
    %1047 = vmatprep.subr.mxu0 0.0
    %1048 = vmatpush1.msra.mxu0 0.0
    %1049 = vmatprep.subr.mxu0 0.0
    %1050 = vmatpush1.msra.mxu0 0.0
    %1051 = vmatprep.subr.mxu0 0.0
    %1052 = vmatpush1.msra.mxu0 0.0
    %1053 = vmatprep.subr.mxu0 0.0
    %1054 = vmatpush1.msra.mxu0 0.0
    %1055 = vmatprep.subr.mxu0 0.0
    %1056 = vmatpush1.msra.mxu0 0.0
    %1057 = vmatprep.subr.mxu0 0.0
    %1058 = vmatpush1.msra.mxu0 0.0
    %1059 = vmatprep.subr.mxu0 0.0
    %1060 = vmatpush1.msra.mxu0 0.0
    %1061 = vmatprep.subr.mxu0 0.0
    %1062 = vmatpush1.msra.mxu0 0.0
    %1063 = vmatprep.subr.mxu0 0.0
    %1064 = vmatpush1.msra.mxu0 0.0
    %1065 = vmatprep.subr.mxu0 0.0
    %1066 = vmatpush1.msra.mxu0 0.0
    %1067 = vmatprep.subr.mxu0 0.0
    %1068 = vmatpush1.msra.mxu0 0.0
    %1069 = vmatprep.subr.mxu0 0.0
    %1070 = vmatpush1.msra.mxu0 0.0
    %1071 = vmatprep.subr.mxu0 0.0
    %1072 = vmatpush1.msra.mxu0 0.0
    %1073 = vmatprep.subr.mxu0 0.0
    %1074 = vmatpush1.msra.mxu0 0.0
    %1075 = vmatprep.subr.mxu0 0.0
    %1076 = vmatpush1.msra.mxu0 0.0
    %1077 = vmatprep.subr.mxu0 0.0
    %1078 = vmatpush1.msra.mxu0 0.0
    %1079 = vmatprep.mubr.f32.mxu0 0.0
    %1080 = vmatmul.mubr.f32.gmra.mrb[0].mxu0 %v1014
    %v1081 = vpop.f32.mrb[0].mxu0
    %v1082 = vadd.f32 0.0, %v1081
    %v1083 = vpop.f32.mrb[0].mxu0
    %v1084 = vadd.f32 0.0, %v1083
    %1085 = vdwg.mxu0
    %1086 = vmatprep.subr.mxu0 %v47
    %1087 = vmatpush1.msra.mxu0 %v46
    %1088 = vmatprep.subr.mxu0 %v51
    %1089 = vmatpush1.msra.mxu0 %v50
    %1090 = vmatprep.subr.mxu0 %v55
    %1091 = vmatpush1.msra.mxu0 %v54
    %1092 = vmatprep.subr.mxu0 %v59
    %1093 = vmatpush1.msra.mxu0 %v58
    %1094 = vmatprep.subr.mxu0 %v63
    %1095 = vmatpush1.msra.mxu0 %v62
    %1096 = vmatprep.subr.mxu0 %v67
    %1097 = vmatpush1.msra.mxu0 %v66
    %1098 = vmatprep.subr.mxu0 %v71
    %1099 = vmatpush1.msra.mxu0 %v70
    %1100 = vmatprep.subr.mxu0 %v75
    %1101 = vmatpush1.msra.mxu0 %v74
    %1102 = vmatprep.subr.mxu0 %v79
    %1103 = vmatpush1.msra.mxu0 %v78
    %1104 = vmatprep.subr.mxu0 %v83
    %1105 = vmatpush1.msra.mxu0 %v82
    %1106 = vmatprep.subr.mxu0 %v87
    %1107 = vmatpush1.msra.mxu0 %v86
    %1108 = vmatprep.subr.mxu0 %v91
    %1109 = vmatpush1.msra.mxu0 %v90
    %1110 = vmatprep.subr.mxu0 %v95
    %1111 = vmatpush1.msra.mxu0 %v94
    %1112 = vmatprep.subr.mxu0 %v99
    %1113 = vmatpush1.msra.mxu0 %v98
    %1114 = vmatprep.subr.mxu0 %v103
    %1115 = vmatpush1.msra.mxu0 %v102
    %1116 = vmatprep.subr.mxu0 %v107
    %1117 = vmatpush1.msra.mxu0 %v106
    %1118 = vmatprep.subr.mxu0 0.0
    %1119 = vmatpush1.msra.mxu0 0.0
    %1120 = vmatprep.subr.mxu0 0.0
    %1121 = vmatpush1.msra.mxu0 0.0
    %1122 = vmatprep.subr.mxu0 0.0
    %1123 = vmatpush1.msra.mxu0 0.0
    %1124 = vmatprep.subr.mxu0 0.0
    %1125 = vmatpush1.msra.mxu0 0.0
    %1126 = vmatprep.subr.mxu0 0.0
    %1127 = vmatpush1.msra.mxu0 0.0
    %1128 = vmatprep.subr.mxu0 0.0
    %1129 = vmatpush1.msra.mxu0 0.0
    %1130 = vmatprep.subr.mxu0 0.0
    %1131 = vmatpush1.msra.mxu0 0.0
    %1132 = vmatprep.subr.mxu0 0.0
    %1133 = vmatpush1.msra.mxu0 0.0
    %1134 = vmatprep.subr.mxu0 0.0
    %1135 = vmatpush1.msra.mxu0 0.0
    %1136 = vmatprep.subr.mxu0 0.0
    %1137 = vmatpush1.msra.mxu0 0.0
    %1138 = vmatprep.subr.mxu0 0.0
    %1139 = vmatpush1.msra.mxu0 0.0
    %1140 = vmatprep.subr.mxu0 0.0
    %1141 = vmatpush1.msra.mxu0 0.0
    %1142 = vmatprep.subr.mxu0 0.0
    %1143 = vmatpush1.msra.mxu0 0.0
    %1144 = vmatprep.subr.mxu0 0.0
    %1145 = vmatpush1.msra.mxu0 0.0
    %1146 = vmatprep.subr.mxu0 0.0
    %1147 = vmatpush1.msra.mxu0 0.0
    %1148 = vmatprep.subr.mxu0 0.0
    %1149 = vmatpush1.msra.mxu0 0.0
    %1150 = vmatprep.mubr.f32.mxu0 0.0
    %1151 = vmatmul.mubr.f32.gmra.mrb[0].mxu0 %v1014
    %v1152 = vpop.f32.mrb[0].mxu0
    %v1153 = vadd.f32 0.0, %v1152
    %v1154 = vpop.f32.mrb[0].mxu0
    %v1155 = vadd.f32 0.0, %v1154
    %1156 = vdwg.mxu0
    %v1157 = vadd.f32 %v224, %v1082
    %v1158 = vadd.f32 %v226, %v1084
    %v1159 = vadd.f32 %v337, %v1153
    %v1160 = vadd.f32 %v339, %v1155
    %v1161 = vmul.f32 %v1157, 0.5
    %v1162 = vmul.f32 %v1158, 0.5
    %v1163 = vmul.f32 %v1159, 0.5
    %v1164 = vtanh.pop %v1161
    %v1165 = vtanh.pop %v1162
    %v1166 = vtanh.pop %v1163
    %v1167 = vmul.f32 %v1164, 0.5
    %v1168 = vmul.f32 %v1165, 0.5
    %v1169 = vmul.f32 %v1166, 0.5
    %v1170 = vadd.f32 %v1167, 0.5
    %v1171 = vadd.f32 %v1168, 0.5
    %v1172 = vadd.f32 %v1169, 0.5
    %v1173 = vtanh.pop %v1160
    %v1174 = vmul.f32 %v1171, %v1012
    %v1175 = vmul.f32 %v1170, %v1173
    %v1176 = vadd.f32 %v1174, %v1175
    %v1177 = vtanh.pop %v1176
    %v1178 = vmul.f32 %v1172, %v1177
    %1179 = vmatprep.subr.mxu0 %v45
    %1180 = vmatpush1.msra.mxu0 %v44
    %1181 = vmatprep.subr.mxu0 %v49
    %1182 = vmatpush1.msra.mxu0 %v48
    %1183 = vmatprep.subr.mxu0 %v53
    %1184 = vmatpush1.msra.mxu0 %v52
    %1185 = vmatprep.subr.mxu0 %v57
    %1186 = vmatpush1.msra.mxu0 %v56
    %1187 = vmatprep.subr.mxu0 %v61
    %1188 = vmatpush1.msra.mxu0 %v60
    %1189 = vmatprep.subr.mxu0 %v65
    %1190 = vmatpush1.msra.mxu0 %v64
    %1191 = vmatprep.subr.mxu0 %v69
    %1192 = vmatpush1.msra.mxu0 %v68
    %1193 = vmatprep.subr.mxu0 %v73
    %1194 = vmatpush1.msra.mxu0 %v72
    %1195 = vmatprep.subr.mxu0 %v77
    %1196 = vmatpush1.msra.mxu0 %v76
    %1197 = vmatprep.subr.mxu0 %v81
    %1198 = vmatpush1.msra.mxu0 %v80
    %1199 = vmatprep.subr.mxu0 %v85
    %1200 = vmatpush1.msra.mxu0 %v84
    %1201 = vmatprep.subr.mxu0 %v89
    %1202 = vmatpush1.msra.mxu0 %v88
    %1203 = vmatprep.subr.mxu0 %v93
    %1204 = vmatpush1.msra.mxu0 %v92
    %1205 = vmatprep.subr.mxu0 %v97
    %1206 = vmatpush1.msra.mxu0 %v96
    %1207 = vmatprep.subr.mxu0 %v101
    %1208 = vmatpush1.msra.mxu0 %v100
    %1209 = vmatprep.subr.mxu0 %v105
    %1210 = vmatpush1.msra.mxu0 %v104
    %1211 = vmatprep.subr.mxu0 0.0
    %1212 = vmatpush1.msra.mxu0 0.0
    %1213 = vmatprep.subr.mxu0 0.0
    %1214 = vmatpush1.msra.mxu0 0.0
    %1215 = vmatprep.subr.mxu0 0.0
    %1216 = vmatpush1.msra.mxu0 0.0
    %1217 = vmatprep.subr.mxu0 0.0
    %1218 = vmatpush1.msra.mxu0 0.0
    %1219 = vmatprep.subr.mxu0 0.0
    %1220 = vmatpush1.msra.mxu0 0.0
    %1221 = vmatprep.subr.mxu0 0.0
    %1222 = vmatpush1.msra.mxu0 0.0
    %1223 = vmatprep.subr.mxu0 0.0
    %1224 = vmatpush1.msra.mxu0 0.0
    %1225 = vmatprep.subr.mxu0 0.0
    %1226 = vmatpush1.msra.mxu0 0.0
    %1227 = vmatprep.subr.mxu0 0.0
    %1228 = vmatpush1.msra.mxu0 0.0
    %1229 = vmatprep.subr.mxu0 0.0
    %1230 = vmatpush1.msra.mxu0 0.0
    %1231 = vmatprep.subr.mxu0 0.0
    %1232 = vmatpush1.msra.mxu0 0.0
    %1233 = vmatprep.subr.mxu0 0.0
    %1234 = vmatpush1.msra.mxu0 0.0
    %1235 = vmatprep.subr.mxu0 0.0
    %1236 = vmatpush1.msra.mxu0 0.0
    %1237 = vmatprep.subr.mxu0 0.0
    %1238 = vmatpush1.msra.mxu0 0.0
    %1239 = vmatprep.subr.mxu0 0.0
    %1240 = vmatpush1.msra.mxu0 0.0
    %1241 = vmatprep.subr.mxu0 0.0
    %1242 = vmatpush1.msra.mxu0 0.0
    %1243 = vmatprep.mubr.f32.mxu0 0.0
    %1244 = vmatmul.mubr.f32.gmra.mrb[0].mxu0 %v1178
    %v1245 = vpop.f32.mrb[0].mxu0
    %v1246 = vadd.f32 0.0, %v1245
    %v1247 = vpop.f32.mrb[0].mxu0
    %v1248 = vadd.f32 0.0, %v1247
    %1249 = vdwg.mxu0
    %1250 = vmatprep.subr.mxu0 %v47
    %1251 = vmatpush1.msra.mxu0 %v46
    %1252 = vmatprep.subr.mxu0 %v51
    %1253 = vmatpush1.msra.mxu0 %v50
    %1254 = vmatprep.subr.mxu0 %v55
    %1255 = vmatpush1.msra.mxu0 %v54
    %1256 = vmatprep.subr.mxu0 %v59
    %1257 = vmatpush1.msra.mxu0 %v58
    %1258 = vmatprep.subr.mxu0 %v63
    %1259 = vmatpush1.msra.mxu0 %v62
    %1260 = vmatprep.subr.mxu0 %v67
    %1261 = vmatpush1.msra.mxu0 %v66
    %1262 = vmatprep.subr.mxu0 %v71
    %1263 = vmatpush1.msra.mxu0 %v70
    %1264 = vmatprep.subr.mxu0 %v75
    %1265 = vmatpush1.msra.mxu0 %v74
    %1266 = vmatprep.subr.mxu0 %v79
    %1267 = vmatpush1.msra.mxu0 %v78
    %1268 = vmatprep.subr.mxu0 %v83
    %1269 = vmatpush1.msra.mxu0 %v82
    %1270 = vmatprep.subr.mxu0 %v87
    %1271 = vmatpush1.msra.mxu0 %v86
    %1272 = vmatprep.subr.mxu0 %v91
    %1273 = vmatpush1.msra.mxu0 %v90
    %1274 = vmatprep.subr.mxu0 %v95
    %1275 = vmatpush1.msra.mxu0 %v94
    %1276 = vmatprep.subr.mxu0 %v99
    %1277 = vmatpush1.msra.mxu0 %v98
    %1278 = vmatprep.subr.mxu0 %v103
    %1279 = vmatpush1.msra.mxu0 %v102
    %1280 = vmatprep.subr.mxu0 %v107
    %1281 = vmatpush1.msra.mxu0 %v106
    %1282 = vmatprep.subr.mxu0 0.0
    %1283 = vmatpush1.msra.mxu0 0.0
    %1284 = vmatprep.subr.mxu0 0.0
    %1285 = vmatpush1.msra.mxu0 0.0
    %1286 = vmatprep.subr.mxu0 0.0
    %1287 = vmatpush1.msra.mxu0 0.0
    %1288 = vmatprep.subr.mxu0 0.0
    %1289 = vmatpush1.msra.mxu0 0.0
    %1290 = vmatprep.subr.mxu0 0.0
    %1291 = vmatpush1.msra.mxu0 0.0
    %1292 = vmatprep.subr.mxu0 0.0
    %1293 = vmatpush1.msra.mxu0 0.0
    %1294 = vmatprep.subr.mxu0 0.0
    %1295 = vmatpush1.msra.mxu0 0.0
    %1296 = vmatprep.subr.mxu0 0.0
    %1297 = vmatpush1.msra.mxu0 0.0
    %1298 = vmatprep.subr.mxu0 0.0
    %1299 = vmatpush1.msra.mxu0 0.0
    %1300 = vmatprep.subr.mxu0 0.0
    %1301 = vmatpush1.msra.mxu0 0.0
    %1302 = vmatprep.subr.mxu0 0.0
    %1303 = vmatpush1.msra.mxu0 0.0
    %1304 = vmatprep.subr.mxu0 0.0
    %1305 = vmatpush1.msra.mxu0 0.0
    %1306 = vmatprep.subr.mxu0 0.0
    %1307 = vmatpush1.msra.mxu0 0.0
    %1308 = vmatprep.subr.mxu0 0.0
    %1309 = vmatpush1.msra.mxu0 0.0
    %1310 = vmatprep.subr.mxu0 0.0
    %1311 = vmatpush1.msra.mxu0 0.0
    %1312 = vmatprep.subr.mxu0 0.0
    %1313 = vmatpush1.msra.mxu0 0.0
    %1314 = vmatprep.mubr.f32.mxu0 0.0
    %1315 = vmatmul.mubr.f32.gmra.mrb[0].mxu0 %v1178
    %v1316 = vpop.f32.mrb[0].mxu0
    %v1317 = vadd.f32 0.0, %v1316
    %v1318 = vpop.f32.mrb[0].mxu0
    %v1319 = vadd.f32 0.0, %v1318
    %1320 = vdwg.mxu0
    %v1321 = vadd.f32 %v230, %v1246
    %v1322 = vadd.f32 %v232, %v1248
    %v1323 = vadd.f32 %v343, %v1317
    %v1324 = vadd.f32 %v345, %v1319
    %v1325 = vmul.f32 %v1321, 0.5
    %v1326 = vmul.f32 %v1322, 0.5
    %v1327 = vmul.f32 %v1323, 0.5
    %v1328 = vtanh.pop %v1325
    %v1329 = vtanh.pop %v1326
    %v1330 = vtanh.pop %v1327
    %v1331 = vmul.f32 %v1328, 0.5
    %v1332 = vmul.f32 %v1329, 0.5
    %v1333 = vmul.f32 %v1330, 0.5
    %v1334 = vadd.f32 %v1331, 0.5
    %v1335 = vadd.f32 %v1332, 0.5
    %v1336 = vadd.f32 %v1333, 0.5
    %v1337 = vtanh.pop %v1324
    %v1338 = vmul.f32 %v1335, %v1176
    %v1339 = vmul.f32 %v1334, %v1337
    %v1340 = vadd.f32 %v1338, %v1339
    %v1341 = vtanh.pop %v1340
    %v1342 = vmul.f32 %v1336, %v1341
    %1343 = vmatprep.subr.mxu0 %v45
    %1344 = vmatpush1.msra.mxu0 %v44
    %1345 = vmatprep.subr.mxu0 %v49
    %1346 = vmatpush1.msra.mxu0 %v48
    %1347 = vmatprep.subr.mxu0 %v53
    %1348 = vmatpush1.msra.mxu0 %v52
    %1349 = vmatprep.subr.mxu0 %v57
    %1350 = vmatpush1.msra.mxu0 %v56
    %1351 = vmatprep.subr.mxu0 %v61
    %1352 = vmatpush1.msra.mxu0 %v60
    %1353 = vmatprep.subr.mxu0 %v65
    %1354 = vmatpush1.msra.mxu0 %v64
    %1355 = vmatprep.subr.mxu0 %v69
    %1356 = vmatpush1.msra.mxu0 %v68
    %1357 = vmatprep.subr.mxu0 %v73
    %1358 = vmatpush1.msra.mxu0 %v72
    %1359 = vmatprep.subr.mxu0 %v77
    %1360 = vmatpush1.msra.mxu0 %v76
    %1361 = vmatprep.subr.mxu0 %v81
    %1362 = vmatpush1.msra.mxu0 %v80
    %1363 = vmatprep.subr.mxu0 %v85
    %1364 = vmatpush1.msra.mxu0 %v84
    %1365 = vmatprep.subr.mxu0 %v89
    %1366 = vmatpush1.msra.mxu0 %v88
    %1367 = vmatprep.subr.mxu0 %v93
    %1368 = vmatpush1.msra.mxu0 %v92
    %1369 = vmatprep.subr.mxu0 %v97
    %1370 = vmatpush1.msra.mxu0 %v96
    %1371 = vmatprep.subr.mxu0 %v101
    %1372 = vmatpush1.msra.mxu0 %v100
    %1373 = vmatprep.subr.mxu0 %v105
    %1374 = vmatpush1.msra.mxu0 %v104
    %1375 = vmatprep.subr.mxu0 0.0
    %1376 = vmatpush1.msra.mxu0 0.0
    %1377 = vmatprep.subr.mxu0 0.0
    %1378 = vmatpush1.msra.mxu0 0.0
    %1379 = vmatprep.subr.mxu0 0.0
    %1380 = vmatpush1.msra.mxu0 0.0
    %1381 = vmatprep.subr.mxu0 0.0
    %1382 = vmatpush1.msra.mxu0 0.0
    %1383 = vmatprep.subr.mxu0 0.0
    %1384 = vmatpush1.msra.mxu0 0.0
    %1385 = vmatprep.subr.mxu0 0.0
    %1386 = vmatpush1.msra.mxu0 0.0
    %1387 = vmatprep.subr.mxu0 0.0
    %1388 = vmatpush1.msra.mxu0 0.0
    %1389 = vmatprep.subr.mxu0 0.0
    %1390 = vmatpush1.msra.mxu0 0.0
    %1391 = vmatprep.subr.mxu0 0.0
    %1392 = vmatpush1.msra.mxu0 0.0
    %1393 = vmatprep.subr.mxu0 0.0
    %1394 = vmatpush1.msra.mxu0 0.0
    %1395 = vmatprep.subr.mxu0 0.0
    %1396 = vmatpush1.msra.mxu0 0.0
    %1397 = vmatprep.subr.mxu0 0.0
    %1398 = vmatpush1.msra.mxu0 0.0
    %1399 = vmatprep.subr.mxu0 0.0
    %1400 = vmatpush1.msra.mxu0 0.0
    %1401 = vmatprep.subr.mxu0 0.0
    %1402 = vmatpush1.msra.mxu0 0.0
    %1403 = vmatprep.subr.mxu0 0.0
    %1404 = vmatpush1.msra.mxu0 0.0
    %1405 = vmatprep.subr.mxu0 0.0
    %1406 = vmatpush1.msra.mxu0 0.0
    %1407 = vmatprep.mubr.f32.mxu0 0.0
    %1408 = vmatmul.mubr.f32.gmra.mrb[0].mxu0 %v1342
    %v1409 = vpop.f32.mrb[0].mxu0
    %v1410 = vadd.f32 0.0, %v1409
    %v1411 = vpop.f32.mrb[0].mxu0
    %v1412 = vadd.f32 0.0, %v1411
    %1413 = vdwg.mxu0
    %1414 = vmatprep.subr.mxu0 %v47
    %1415 = vmatpush1.msra.mxu0 %v46
    %1416 = vmatprep.subr.mxu0 %v51
    %1417 = vmatpush1.msra.mxu0 %v50
    %1418 = vmatprep.subr.mxu0 %v55
    %1419 = vmatpush1.msra.mxu0 %v54
    %1420 = vmatprep.subr.mxu0 %v59
    %1421 = vmatpush1.msra.mxu0 %v58
    %1422 = vmatprep.subr.mxu0 %v63
    %1423 = vmatpush1.msra.mxu0 %v62
    %1424 = vmatprep.subr.mxu0 %v67
    %1425 = vmatpush1.msra.mxu0 %v66
    %1426 = vmatprep.subr.mxu0 %v71
    %1427 = vmatpush1.msra.mxu0 %v70
    %1428 = vmatprep.subr.mxu0 %v75
    %1429 = vmatpush1.msra.mxu0 %v74
    %1430 = vmatprep.subr.mxu0 %v79
    %1431 = vmatpush1.msra.mxu0 %v78
    %1432 = vmatprep.subr.mxu0 %v83
    %1433 = vmatpush1.msra.mxu0 %v82
    %1434 = vmatprep.subr.mxu0 %v87
    %1435 = vmatpush1.msra.mxu0 %v86
    %1436 = vmatprep.subr.mxu0 %v91
    %1437 = vmatpush1.msra.mxu0 %v90
    %1438 = vmatprep.subr.mxu0 %v95
    %1439 = vmatpush1.msra.mxu0 %v94
    %1440 = vmatprep.subr.mxu0 %v99
    %1441 = vmatpush1.msra.mxu0 %v98
    %1442 = vmatprep.subr.mxu0 %v103
    %1443 = vmatpush1.msra.mxu0 %v102
    %1444 = vmatprep.subr.mxu0 %v107
    %1445 = vmatpush1.msra.mxu0 %v106
    %1446 = vmatprep.subr.mxu0 0.0
    %1447 = vmatpush1.msra.mxu0 0.0
    %1448 = vmatprep.subr.mxu0 0.0
    %1449 = vmatpush1.msra.mxu0 0.0
    %1450 = vmatprep.subr.mxu0 0.0
    %1451 = vmatpush1.msra.mxu0 0.0
    %1452 = vmatprep.subr.mxu0 0.0
    %1453 = vmatpush1.msra.mxu0 0.0
    %1454 = vmatprep.subr.mxu0 0.0
    %1455 = vmatpush1.msra.mxu0 0.0
    %1456 = vmatprep.subr.mxu0 0.0
    %1457 = vmatpush1.msra.mxu0 0.0
    %1458 = vmatprep.subr.mxu0 0.0
    %1459 = vmatpush1.msra.mxu0 0.0
    %1460 = vmatprep.subr.mxu0 0.0
    %1461 = vmatpush1.msra.mxu0 0.0
    %1462 = vmatprep.subr.mxu0 0.0
    %1463 = vmatpush1.msra.mxu0 0.0
    %1464 = vmatprep.subr.mxu0 0.0
    %1465 = vmatpush1.msra.mxu0 0.0
    %1466 = vmatprep.subr.mxu0 0.0
    %1467 = vmatpush1.msra.mxu0 0.0
    %1468 = vmatprep.subr.mxu0 0.0
    %1469 = vmatpush1.msra.mxu0 0.0
    %1470 = vmatprep.subr.mxu0 0.0
    %1471 = vmatpush1.msra.mxu0 0.0
    %1472 = vmatprep.subr.mxu0 0.0
    %1473 = vmatpush1.msra.mxu0 0.0
    %1474 = vmatprep.subr.mxu0 0.0
    %1475 = vmatpush1.msra.mxu0 0.0
    %1476 = vmatprep.subr.mxu0 0.0
    %1477 = vmatpush1.msra.mxu0 0.0
    %1478 = vmatprep.mubr.f32.mxu0 0.0
    %1479 = vmatmul.mubr.f32.gmra.mrb[0].mxu0 %v1342
    %v1480 = vpop.f32.mrb[0].mxu0
    %v1481 = vadd.f32 0.0, %v1480
    %v1482 = vpop.f32.mrb[0].mxu0
    %v1483 = vadd.f32 0.0, %v1482
    %1484 = vdwg.mxu0
    %v1485 = vadd.f32 %v236, %v1410
    %v1486 = vadd.f32 %v238, %v1412
    %v1487 = vadd.f32 %v349, %v1481
    %v1488 = vadd.f32 %v351, %v1483
    %v1489 = vmul.f32 %v1485, 0.5
    %v1490 = vmul.f32 %v1486, 0.5
    %v1491 = vmul.f32 %v1487, 0.5
    %v1492 = vtanh.pop %v1489
    %v1493 = vtanh.pop %v1490
    %v1494 = vtanh.pop %v1491
    %v1495 = vmul.f32 %v1492, 0.5
    %v1496 = vmul.f32 %v1493, 0.5
    %v1497 = vmul.f32 %v1494, 0.5
    %v1498 = vadd.f32 %v1495, 0.5
    %v1499 = vadd.f32 %v1496, 0.5
    %v1500 = vadd.f32 %v1497, 0.5
    %v1501 = vtanh.pop %v1488
    %v1502 = vmul.f32 %v1499, %v1340
    %v1503 = vmul.f32 %v1498, %v1501
    %v1504 = vadd.f32 %v1502, %v1503
    %v1505 = vtanh.pop %v1504
    %v1506 = vmul.f32 %v1500, %v1505
    %1507 = vmatprep.subr.mxu0 %v45
    %1508 = vmatpush1.msra.mxu0 %v44
    %1509 = vmatprep.subr.mxu0 %v49
    %1510 = vmatpush1.msra.mxu0 %v48
    %1511 = vmatprep.subr.mxu0 %v53
    %1512 = vmatpush1.msra.mxu0 %v52
    %1513 = vmatprep.subr.mxu0 %v57
    %1514 = vmatpush1.msra.mxu0 %v56
    %1515 = vmatprep.subr.mxu0 %v61
    %1516 = vmatpush1.msra.mxu0 %v60
    %1517 = vmatprep.subr.mxu0 %v65
    %1518 = vmatpush1.msra.mxu0 %v64
    %1519 = vmatprep.subr.mxu0 %v69
    %1520 = vmatpush1.msra.mxu0 %v68
    %1521 = vmatprep.subr.mxu0 %v73
    %1522 = vmatpush1.msra.mxu0 %v72
    %1523 = vmatprep.subr.mxu0 %v77
    %1524 = vmatpush1.msra.mxu0 %v76
    %1525 = vmatprep.subr.mxu0 %v81
    %1526 = vmatpush1.msra.mxu0 %v80
    %1527 = vmatprep.subr.mxu0 %v85
    %1528 = vmatpush1.msra.mxu0 %v84
    %1529 = vmatprep.subr.mxu0 %v89
    %1530 = vmatpush1.msra.mxu0 %v88
    %1531 = vmatprep.subr.mxu0 %v93
    %1532 = vmatpush1.msra.mxu0 %v92
    %1533 = vmatprep.subr.mxu0 %v97
    %1534 = vmatpush1.msra.mxu0 %v96
    %1535 = vmatprep.subr.mxu0 %v101
    %1536 = vmatpush1.msra.mxu0 %v100
    %1537 = vmatprep.subr.mxu0 %v105
    %1538 = vmatpush1.msra.mxu0 %v104
    %1539 = vmatprep.subr.mxu0 0.0
    %1540 = vmatpush1.msra.mxu0 0.0
    %1541 = vmatprep.subr.mxu0 0.0
    %1542 = vmatpush1.msra.mxu0 0.0
    %1543 = vmatprep.subr.mxu0 0.0
    %1544 = vmatpush1.msra.mxu0 0.0
    %1545 = vmatprep.subr.mxu0 0.0
    %1546 = vmatpush1.msra.mxu0 0.0
    %1547 = vmatprep.subr.mxu0 0.0
    %1548 = vmatpush1.msra.mxu0 0.0
    %1549 = vmatprep.subr.mxu0 0.0
    %1550 = vmatpush1.msra.mxu0 0.0
    %1551 = vmatprep.subr.mxu0 0.0
    %1552 = vmatpush1.msra.mxu0 0.0
    %1553 = vmatprep.subr.mxu0 0.0
    %1554 = vmatpush1.msra.mxu0 0.0
    %1555 = vmatprep.subr.mxu0 0.0
    %1556 = vmatpush1.msra.mxu0 0.0
    %1557 = vmatprep.subr.mxu0 0.0
    %1558 = vmatpush1.msra.mxu0 0.0
    %1559 = vmatprep.subr.mxu0 0.0
    %1560 = vmatpush1.msra.mxu0 0.0
    %1561 = vmatprep.subr.mxu0 0.0
    %1562 = vmatpush1.msra.mxu0 0.0
    %1563 = vmatprep.subr.mxu0 0.0
    %1564 = vmatpush1.msra.mxu0 0.0
    %1565 = vmatprep.subr.mxu0 0.0
    %1566 = vmatpush1.msra.mxu0 0.0
    %1567 = vmatprep.subr.mxu0 0.0
    %1568 = vmatpush1.msra.mxu0 0.0
    %1569 = vmatprep.subr.mxu0 0.0
    %1570 = vmatpush1.msra.mxu0 0.0
    %1571 = vmatprep.mubr.f32.mxu0 0.0
    %1572 = vmatmul.mubr.f32.gmra.mrb[0].mxu0 %v1506
    %v1573 = vpop.f32.mrb[0].mxu0
    %v1574 = vadd.f32 0.0, %v1573
    %v1575 = vpop.f32.mrb[0].mxu0
    %v1576 = vadd.f32 0.0, %v1575
    %1577 = vdwg.mxu0
    %1578 = vmatprep.subr.mxu0 %v47
    %1579 = vmatpush1.msra.mxu0 %v46
    %1580 = vmatprep.subr.mxu0 %v51
    %1581 = vmatpush1.msra.mxu0 %v50
    %1582 = vmatprep.subr.mxu0 %v55
    %1583 = vmatpush1.msra.mxu0 %v54
    %1584 = vmatprep.subr.mxu0 %v59
    %1585 = vmatpush1.msra.mxu0 %v58
    %1586 = vmatprep.subr.mxu0 %v63
    %1587 = vmatpush1.msra.mxu0 %v62
    %1588 = vmatprep.subr.mxu0 %v67
    %1589 = vmatpush1.msra.mxu0 %v66
    %1590 = vmatprep.subr.mxu0 %v71
    %1591 = vmatpush1.msra.mxu0 %v70
    %1592 = vmatprep.subr.mxu0 %v75
    %1593 = vmatpush1.msra.mxu0 %v74
    %1594 = vmatprep.subr.mxu0 %v79
    %1595 = vmatpush1.msra.mxu0 %v78
    %1596 = vmatprep.subr.mxu0 %v83
    %1597 = vmatpush1.msra.mxu0 %v82
    %1598 = vmatprep.subr.mxu0 %v87
    %1599 = vmatpush1.msra.mxu0 %v86
    %1600 = vmatprep.subr.mxu0 %v91
    %1601 = vmatpush1.msra.mxu0 %v90
    %1602 = vmatprep.subr.mxu0 %v95
    %1603 = vmatpush1.msra.mxu0 %v94
    %1604 = vmatprep.subr.mxu0 %v99
    %1605 = vmatpush1.msra.mxu0 %v98
    %1606 = vmatprep.subr.mxu0 %v103
    %1607 = vmatpush1.msra.mxu0 %v102
    %1608 = vmatprep.subr.mxu0 %v107
    %1609 = vmatpush1.msra.mxu0 %v106
    %1610 = vmatprep.subr.mxu0 0.0
    %1611 = vmatpush1.msra.mxu0 0.0
    %1612 = vmatprep.subr.mxu0 0.0
    %1613 = vmatpush1.msra.mxu0 0.0
    %1614 = vmatprep.subr.mxu0 0.0
    %1615 = vmatpush1.msra.mxu0 0.0
    %1616 = vmatprep.subr.mxu0 0.0
    %1617 = vmatpush1.msra.mxu0 0.0
    %1618 = vmatprep.subr.mxu0 0.0
    %1619 = vmatpush1.msra.mxu0 0.0
    %1620 = vmatprep.subr.mxu0 0.0
    %1621 = vmatpush1.msra.mxu0 0.0
    %1622 = vmatprep.subr.mxu0 0.0
    %1623 = vmatpush1.msra.mxu0 0.0
    %1624 = vmatprep.subr.mxu0 0.0
    %1625 = vmatpush1.msra.mxu0 0.0
    %1626 = vmatprep.subr.mxu0 0.0
    %1627 = vmatpush1.msra.mxu0 0.0
    %1628 = vmatprep.subr.mxu0 0.0
    %1629 = vmatpush1.msra.mxu0 0.0
    %1630 = vmatprep.subr.mxu0 0.0
    %1631 = vmatpush1.msra.mxu0 0.0
    %1632 = vmatprep.subr.mxu0 0.0
    %1633 = vmatpush1.msra.mxu0 0.0
    %1634 = vmatprep.subr.mxu0 0.0
    %1635 = vmatpush1.msra.mxu0 0.0
    %1636 = vmatprep.subr.mxu0 0.0
    %1637 = vmatpush1.msra.mxu0 0.0
    %1638 = vmatprep.subr.mxu0 0.0
    %1639 = vmatpush1.msra.mxu0 0.0
    %1640 = vmatprep.subr.mxu0 0.0
    %1641 = vmatpush1.msra.mxu0 0.0
    %1642 = vmatprep.mubr.f32.mxu0 0.0
    %1643 = vmatmul.mubr.f32.gmra.mrb[0].mxu0 %v1506
    %v1644 = vpop.f32.mrb[0].mxu0
    %v1645 = vadd.f32 0.0, %v1644
    %v1646 = vpop.f32.mrb[0].mxu0
    %v1647 = vadd.f32 0.0, %v1646
    %1648 = vdwg.mxu0
    %v1649 = vadd.f32 %v242, %v1574
    %v1650 = vadd.f32 %v244, %v1576
    %v1651 = vadd.f32 %v355, %v1645
    %v1652 = vadd.f32 %v357, %v1647
    %v1653 = vmul.f32 %v1649, 0.5
    %v1654 = vmul.f32 %v1650, 0.5
    %v1655 = vmul.f32 %v1651, 0.5
    %v1656 = vtanh.pop %v1653
    %v1657 = vtanh.pop %v1654
    %v1658 = vtanh.pop %v1655
    %v1659 = vmul.f32 %v1656, 0.5
    %v1660 = vmul.f32 %v1657, 0.5
    %v1661 = vmul.f32 %v1658, 0.5
    %v1662 = vadd.f32 %v1659, 0.5
    %v1663 = vadd.f32 %v1660, 0.5
    %v1664 = vadd.f32 %v1661, 0.5
    %v1665 = vtanh.pop %v1652
    %v1666 = vmul.f32 %v1663, %v1504
    %v1667 = vmul.f32 %v1662, %v1665
    %v1668 = vadd.f32 %v1666, %v1667
    %v1669 = vtanh.pop %v1668
    %v1670 = vmul.f32 %v1664, %v1669
    %1671 = vmatprep.subr.mxu0 %v41
    %1672 = vmatpush1.msra.mxu0 %v40
    %1673 = vmatprep.subr.mxu0 0.0
    %1674 = vmatpush1.msra.mxu0 0.0
    %1675 = vmatprep.subr.mxu0 0.0
    %1676 = vmatpush1.msra.mxu0 0.0
    %1677 = vmatprep.subr.mxu0 0.0
    %1678 = vmatpush1.msra.mxu0 0.0
    %1679 = vmatprep.subr.mxu0 0.0
    %1680 = vmatpush1.msra.mxu0 0.0
    %1681 = vmatprep.subr.mxu0 0.0
    %1682 = vmatpush1.msra.mxu0 0.0
    %1683 = vmatprep.subr.mxu0 0.0
    %1684 = vmatpush1.msra.mxu0 0.0
    %1685 = vmatprep.subr.mxu0 0.0
    %1686 = vmatpush1.msra.mxu0 0.0
    %1687 = vmatprep.subr.mxu0 0.0
    %1688 = vmatpush1.msra.mxu0 0.0
    %1689 = vmatprep.subr.mxu0 0.0
    %1690 = vmatpush1.msra.mxu0 0.0
    %1691 = vmatprep.subr.mxu0 0.0
    %1692 = vmatpush1.msra.mxu0 0.0
    %1693 = vmatprep.subr.mxu0 0.0
    %1694 = vmatpush1.msra.mxu0 0.0
    %1695 = vmatprep.subr.mxu0 0.0
    %1696 = vmatpush1.msra.mxu0 0.0
    %1697 = vmatprep.subr.mxu0 0.0
    %1698 = vmatpush1.msra.mxu0 0.0
    %1699 = vmatprep.subr.mxu0 0.0
    %1700 = vmatpush1.msra.mxu0 0.0
    %1701 = vmatprep.subr.mxu0 0.0
    %1702 = vmatpush1.msra.mxu0 0.0
    %1703 = vmatprep.subr.mxu0 0.0
    %1704 = vmatpush1.msra.mxu0 0.0
    %1705 = vmatprep.subr.mxu0 0.0
    %1706 = vmatpush1.msra.mxu0 0.0
    %1707 = vmatprep.subr.mxu0 0.0
    %1708 = vmatpush1.msra.mxu0 0.0
    %1709 = vmatprep.subr.mxu0 0.0
    %1710 = vmatpush1.msra.mxu0 0.0
    %1711 = vmatprep.subr.mxu0 0.0
    %1712 = vmatpush1.msra.mxu0 0.0
    %1713 = vmatprep.subr.mxu0 0.0
    %1714 = vmatpush1.msra.mxu0 0.0
    %1715 = vmatprep.subr.mxu0 0.0
    %1716 = vmatpush1.msra.mxu0 0.0
    %1717 = vmatprep.subr.mxu0 0.0
    %1718 = vmatpush1.msra.mxu0 0.0
    %1719 = vmatprep.subr.mxu0 0.0
    %1720 = vmatpush1.msra.mxu0 0.0
    %1721 = vmatprep.subr.mxu0 0.0
    %1722 = vmatpush1.msra.mxu0 0.0
    %1723 = vmatprep.subr.mxu0 0.0
    %1724 = vmatpush1.msra.mxu0 0.0
    %1725 = vmatprep.subr.mxu0 0.0
    %1726 = vmatpush1.msra.mxu0 0.0
    %1727 = vmatprep.subr.mxu0 0.0
    %1728 = vmatpush1.msra.mxu0 0.0
    %1729 = vmatprep.subr.mxu0 0.0
    %1730 = vmatpush1.msra.mxu0 0.0
    %1731 = vmatprep.subr.mxu0 0.0
    %1732 = vmatpush1.msra.mxu0 0.0
    %1733 = vmatprep.subr.mxu0 0.0
    %1734 = vmatpush1.msra.mxu0 0.0
    %1735 = vmatprep.mubr.f32.mxu0 0.0
    %1736 = vmatmul.mubr.f32.gmra.mrb[0].mxu0 %v131
    %v1737 = vpop.f32.mrb[0].mxu0
    %v1738 = vadd.f32 0.0, %v1737
    %v1739 = vpop.f32.mrb[0].mxu0
    %1740 = vdwg.mxu0
    %1741 = vmatprep.subr.mxu0 %v43
    %1742 = vmatpush1.msra.mxu0 %v42
    %1743 = vmatprep.subr.mxu0 0.0
    %1744 = vmatpush1.msra.mxu0 0.0
    %1745 = vmatprep.subr.mxu0 0.0
    %1746 = vmatpush1.msra.mxu0 0.0
    %1747 = vmatprep.subr.mxu0 0.0
    %1748 = vmatpush1.msra.mxu0 0.0
    %1749 = vmatprep.subr.mxu0 0.0
    %1750 = vmatpush1.msra.mxu0 0.0
    %1751 = vmatprep.subr.mxu0 0.0
    %1752 = vmatpush1.msra.mxu0 0.0
    %1753 = vmatprep.subr.mxu0 0.0
    %1754 = vmatpush1.msra.mxu0 0.0
    %1755 = vmatprep.subr.mxu0 0.0
    %1756 = vmatpush1.msra.mxu0 0.0
    %1757 = vmatprep.subr.mxu0 0.0
    %1758 = vmatpush1.msra.mxu0 0.0
    %1759 = vmatprep.subr.mxu0 0.0
    %1760 = vmatpush1.msra.mxu0 0.0
    %1761 = vmatprep.subr.mxu0 0.0
    %1762 = vmatpush1.msra.mxu0 0.0
    %1763 = vmatprep.subr.mxu0 0.0
    %1764 = vmatpush1.msra.mxu0 0.0
    %1765 = vmatprep.subr.mxu0 0.0
    %1766 = vmatpush1.msra.mxu0 0.0
    %1767 = vmatprep.subr.mxu0 0.0
    %1768 = vmatpush1.msra.mxu0 0.0
    %1769 = vmatprep.subr.mxu0 0.0
    %1770 = vmatpush1.msra.mxu0 0.0
    %1771 = vmatprep.subr.mxu0 0.0
    %1772 = vmatpush1.msra.mxu0 0.0
    %1773 = vmatprep.subr.mxu0 0.0
    %1774 = vmatpush1.msra.mxu0 0.0
    %1775 = vmatprep.subr.mxu0 0.0
    %1776 = vmatpush1.msra.mxu0 0.0
    %1777 = vmatprep.subr.mxu0 0.0
    %1778 = vmatpush1.msra.mxu0 0.0
    %1779 = vmatprep.subr.mxu0 0.0
    %1780 = vmatpush1.msra.mxu0 0.0
    %1781 = vmatprep.subr.mxu0 0.0
    %1782 = vmatpush1.msra.mxu0 0.0
    %1783 = vmatprep.subr.mxu0 0.0
    %1784 = vmatpush1.msra.mxu0 0.0
    %1785 = vmatprep.subr.mxu0 0.0
    %1786 = vmatpush1.msra.mxu0 0.0
    %1787 = vmatprep.subr.mxu0 0.0
    %1788 = vmatpush1.msra.mxu0 0.0
    %1789 = vmatprep.subr.mxu0 0.0
    %1790 = vmatpush1.msra.mxu0 0.0
    %1791 = vmatprep.subr.mxu0 0.0
    %1792 = vmatpush1.msra.mxu0 0.0
    %1793 = vmatprep.subr.mxu0 0.0
    %1794 = vmatpush1.msra.mxu0 0.0
    %1795 = vmatprep.subr.mxu0 0.0
    %1796 = vmatpush1.msra.mxu0 0.0
    %1797 = vmatprep.subr.mxu0 0.0
    %1798 = vmatpush1.msra.mxu0 0.0
    %1799 = vmatprep.subr.mxu0 0.0
    %1800 = vmatpush1.msra.mxu0 0.0
    %1801 = vmatprep.subr.mxu0 0.0
    %1802 = vmatpush1.msra.mxu0 0.0
    %1803 = vmatprep.subr.mxu0 0.0
    %1804 = vmatpush1.msra.mxu0 0.0
    %1805 = vmatprep.mubr.f32.mxu0 0.0
    %1806 = vmatmul.mubr.f32.gmra.mrb[0].mxu0 %v131
    %v1807 = vpop.f32.mrb[0].mxu0
    %v1808 = vadd.f32 0.0, %v1807
    %v1809 = vpop.f32.mrb[0].mxu0
    %v1810 = vadd.f32 0.0, %v1809
    %1811 = vdwg.mxu0
    %v1812 = vmul.f32 %v1738, 0.5
    %v1813 = vtanh.pop %v1812
    %v1814 = vmul.f32 %v1813, 0.5
    %v1815 = vadd.f32 %v1814, 0.5
    %v1816 = vtanh.pop %v1810
    %v1817 = vmul.f32 %v1815, %v1816
    %v1818 = vmul.f32 %v1808, 0.5
    %v1819 = vtanh.pop %v1818
    %v1820 = vmul.f32 %v1819, 0.5
    %v1821 = vadd.f32 %v1820, 0.5
    %v1822 = vtanh.pop %v1817
    %v1823 = vmul.f32 %v1821, %v1822
    %v1824 = vld [vmem:[%s2] sm:$0xff]
    %v1825 = vld [vmem:[%s2 + $0x8] sm:$0xff]
    %v1826 = vld [vmem:[%s2 + $0x10] sm:$0xff]
    %v1827 = vld [vmem:[%s2 + $0x18] sm:$0xff]
    %v1828 = vld [vmem:[%s2 + $0x20] sm:$0xff]
    %v1829 = vld [vmem:[%s2 + $0x28] sm:$0xff]
    %v1830 = vld [vmem:[%s2 + $0x30] sm:$0xff]
    %v1831 = vld [vmem:[%s2 + $0x38] sm:$0xff]
    %v1832 = vld [vmem:[%s2 + $0x40] sm:$0xff]
    %v1833 = vld [vmem:[%s2 + $0x48] sm:$0xff]
    %v1834 = vld [vmem:[%s2 + $0x50] sm:$0xff]
    %v1835 = vld [vmem:[%s2 + $0x58] sm:$0xff]
    %v1836 = vld [vmem:[%s2 + $0x60] sm:$0xff]
    %v1837 = vld [vmem:[%s2 + $0x68] sm:$0xff]
    %v1838 = vld [vmem:[%s2 + $0x70] sm:$0xff]
    %v1839 = vld [vmem:[%s2 + $0x78] sm:$0xff]
    %v1840 = vld [vmem:[%s2 + $0x80] sm:$0xff]
    %v1841 = vld [vmem:[%s2 + $0x88] sm:$0xff]
    %v1842 = vld [vmem:[%s2 + $0x90] sm:$0xff]
    %v1843 = vld [vmem:[%s2 + $0x98] sm:$0xff]
    %v1844 = vld [vmem:[%s2 + $0xa0] sm:$0xff]
    %v1845 = vld [vmem:[%s2 + $0xa8] sm:$0xff]
    %v1846 = vld [vmem:[%s2 + $0xb0] sm:$0xff]
    %v1847 = vld [vmem:[%s2 + $0xb8] sm:$0xff]
    %v1848 = vld [vmem:[%s2 + $0xc0] sm:$0xff]
    %v1849 = vld [vmem:[%s2 + $0xc8] sm:$0xff]
    %v1850 = vld [vmem:[%s2 + $0xd0] sm:$0xff]
    %v1851 = vld [vmem:[%s2 + $0xd8] sm:$0xff]
    %v1852 = vld [vmem:[%s2 + $0xe0] sm:$0xff]
    %v1853 = vld [vmem:[%s2 + $0xe8] sm:$0xff]
    %v1854 = vld [vmem:[%s2 + $0xf0] sm:$0xff]
    %v1855 = vld [vmem:[%s2 + $0xf8] sm:$0xff]
    %1856 = vmatprep.subr.mxu0 0.0
    %1857 = vmatpush1.msra.mxu0 %v1840
    %1858 = vmatprep.subr.mxu0 0.0
    %1859 = vmatpush1.msra.mxu0 %v1841
    %1860 = vmatprep.subr.mxu0 0.0
    %1861 = vmatpush1.msra.mxu0 %v1842
    %1862 = vmatprep.subr.mxu0 0.0
    %1863 = vmatpush1.msra.mxu0 %v1843
    %1864 = vmatprep.subr.mxu0 0.0
    %1865 = vmatpush1.msra.mxu0 %v1844
    %1866 = vmatprep.subr.mxu0 0.0
    %1867 = vmatpush1.msra.mxu0 %v1845
    %1868 = vmatprep.subr.mxu0 0.0
    %1869 = vmatpush1.msra.mxu0 %v1846
    %1870 = vmatprep.subr.mxu0 0.0
    %1871 = vmatpush1.msra.mxu0 %v1847
    %1872 = vmatprep.subr.mxu0 0.0
    %1873 = vmatpush1.msra.mxu0 %v1848
    %1874 = vmatprep.subr.mxu0 0.0
    %1875 = vmatpush1.msra.mxu0 %v1849
    %1876 = vmatprep.subr.mxu0 0.0
    %1877 = vmatpush1.msra.mxu0 %v1850
    %1878 = vmatprep.subr.mxu0 0.0
    %1879 = vmatpush1.msra.mxu0 %v1851
    %1880 = vmatprep.subr.mxu0 0.0
    %1881 = vmatpush1.msra.mxu0 %v1852
    %1882 = vmatprep.subr.mxu0 0.0
    %1883 = vmatpush1.msra.mxu0 %v1853
    %1884 = vmatprep.subr.mxu0 0.0
    %1885 = vmatpush1.msra.mxu0 %v1854
    %1886 = vmatprep.subr.mxu0 0.0
    %1887 = vmatpush1.msra.mxu0 %v1855
    %1888 = vmatprep.subr.mxu0 0.0
    %1889 = vmatpush1.msra.mxu0 0.0
    %1890 = vmatprep.subr.mxu0 0.0
    %1891 = vmatpush1.msra.mxu0 0.0
    %1892 = vmatprep.subr.mxu0 0.0
    %1893 = vmatpush1.msra.mxu0 0.0
    %1894 = vmatprep.subr.mxu0 0.0
    %1895 = vmatpush1.msra.mxu0 0.0
    %1896 = vmatprep.subr.mxu0 0.0
    %1897 = vmatpush1.msra.mxu0 0.0
    %1898 = vmatprep.subr.mxu0 0.0
    %1899 = vmatpush1.msra.mxu0 0.0
    %1900 = vmatprep.subr.mxu0 0.0
    %1901 = vmatpush1.msra.mxu0 0.0
    %1902 = vmatprep.subr.mxu0 0.0
    %1903 = vmatpush1.msra.mxu0 0.0
    %1904 = vmatprep.subr.mxu0 0.0
    %1905 = vmatpush1.msra.mxu0 0.0
    %1906 = vmatprep.subr.mxu0 0.0
    %1907 = vmatpush1.msra.mxu0 0.0
    %1908 = vmatprep.subr.mxu0 0.0
    %1909 = vmatpush1.msra.mxu0 0.0
    %1910 = vmatprep.subr.mxu0 0.0
    %1911 = vmatpush1.msra.mxu0 0.0
    %1912 = vmatprep.subr.mxu0 0.0
    %1913 = vmatpush1.msra.mxu0 0.0
    %1914 = vmatprep.subr.mxu0 0.0
    %1915 = vmatpush1.msra.mxu0 0.0
    %1916 = vmatprep.subr.mxu0 0.0
    %1917 = vmatpush1.msra.mxu0 0.0
    %1918 = vmatprep.subr.mxu0 0.0
    %1919 = vmatpush1.msra.mxu0 0.0
    %1920 = vmatprep.mubr.f32.mxu0 0.0
    %1921 = vmatmul.mubr.f32.gmra.mrb[0].mxu0 %v1823
    %v1922 = vpop.f32.mrb[0].mxu0
    %v1923 = vadd.f32 0.0, %v1922
    %v1924 = vpop.f32.mrb[0].mxu0
    %1925 = vdwg.mxu0
    %1926 = vmatprep.subr.mxu0 0.0
    %1927 = vmatpush1.msra.mxu0 %v1824
    %1928 = vmatprep.subr.mxu0 0.0
    %1929 = vmatpush1.msra.mxu0 %v1825
    %1930 = vmatprep.subr.mxu0 0.0
    %1931 = vmatpush1.msra.mxu0 %v1826
    %1932 = vmatprep.subr.mxu0 0.0
    %1933 = vmatpush1.msra.mxu0 %v1827
    %1934 = vmatprep.subr.mxu0 0.0
    %1935 = vmatpush1.msra.mxu0 %v1828
    %1936 = vmatprep.subr.mxu0 0.0
    %1937 = vmatpush1.msra.mxu0 %v1829
    %1938 = vmatprep.subr.mxu0 0.0
    %1939 = vmatpush1.msra.mxu0 %v1830
    %1940 = vmatprep.subr.mxu0 0.0
    %1941 = vmatpush1.msra.mxu0 %v1831
    %1942 = vmatprep.subr.mxu0 0.0
    %1943 = vmatpush1.msra.mxu0 %v1832
    %1944 = vmatprep.subr.mxu0 0.0
    %1945 = vmatpush1.msra.mxu0 %v1833
    %1946 = vmatprep.subr.mxu0 0.0
    %1947 = vmatpush1.msra.mxu0 %v1834
    %1948 = vmatprep.subr.mxu0 0.0
    %1949 = vmatpush1.msra.mxu0 %v1835
    %1950 = vmatprep.subr.mxu0 0.0
    %1951 = vmatpush1.msra.mxu0 %v1836
    %1952 = vmatprep.subr.mxu0 0.0
    %1953 = vmatpush1.msra.mxu0 %v1837
    %1954 = vmatprep.subr.mxu0 0.0
    %1955 = vmatpush1.msra.mxu0 %v1838
    %1956 = vmatprep.subr.mxu0 0.0
    %1957 = vmatpush1.msra.mxu0 %v1839
    %1958 = vmatprep.subr.mxu0 0.0
    %1959 = vmatpush1.msra.mxu0 0.0
    %1960 = vmatprep.subr.mxu0 0.0
    %1961 = vmatpush1.msra.mxu0 0.0
    %1962 = vmatprep.subr.mxu0 0.0
    %1963 = vmatpush1.msra.mxu0 0.0
    %1964 = vmatprep.subr.mxu0 0.0
    %1965 = vmatpush1.msra.mxu0 0.0
    %1966 = vmatprep.subr.mxu0 0.0
    %1967 = vmatpush1.msra.mxu0 0.0
    %1968 = vmatprep.subr.mxu0 0.0
    %1969 = vmatpush1.msra.mxu0 0.0
    %1970 = vmatprep.subr.mxu0 0.0
    %1971 = vmatpush1.msra.mxu0 0.0
    %1972 = vmatprep.subr.mxu0 0.0
    %1973 = vmatpush1.msra.mxu0 0.0
    %1974 = vmatprep.subr.mxu0 0.0
    %1975 = vmatpush1.msra.mxu0 0.0
    %1976 = vmatprep.subr.mxu0 0.0
    %1977 = vmatpush1.msra.mxu0 0.0
    %1978 = vmatprep.subr.mxu0 0.0
    %1979 = vmatpush1.msra.mxu0 0.0
    %1980 = vmatprep.subr.mxu0 0.0
    %1981 = vmatpush1.msra.mxu0 0.0
    %1982 = vmatprep.subr.mxu0 0.0
    %1983 = vmatpush1.msra.mxu0 0.0
    %1984 = vmatprep.subr.mxu0 0.0
    %1985 = vmatpush1.msra.mxu0 0.0
    %1986 = vmatprep.subr.mxu0 0.0
    %1987 = vmatpush1.msra.mxu0 0.0
    %1988 = vmatprep.subr.mxu0 0.0
    %1989 = vmatpush1.msra.mxu0 0.0
    %1990 = vmatprep.mubr.f32.mxu0 0.0
    %1991 = vmatmul.mubr.f32.gmra.mrb[0].mxu0 %v1670
    %v1992 = vpop.f32.mrb[0].mxu0
    %v1993 = vadd.f32 %v1923, %v1992
    %v1994 = vpop.f32.mrb[0].mxu0
    %1995 = vdwg.mxu0
    %v1996 = vld [vmem:[%s2 + $0x100] sm:$0x1]
    %v1997 = vlaneseq
    %v1998 = vshrl.u32 %v1997, 7
    %v1999 = vsub.s32 0, %v1998
    %v2000 = vrot.slane %v1996, %v1999
    %v2001 = vadd.f32 %v1993, %v2000
    %vm2002 = vcmask 23552
    %2003 = vst.msk [vmem:[%s3] sm:$0xff] %vm2002, %v2001
    // Predicated region
    $region18: #{lstm_model_forward.1} parent=1 // pred_check
      _
    $region19: #{lstm_model_forward.1} parent=1 // pred_check_branch
      %2005 = sbr.rel (0) target = $region21
    $region20: #{lstm_model_forward.1} parent=1 // pred_region
      _
    $region21: #{lstm_model_forward.1} parent=1 // pred_fallthru
      _
    // Predicated region
    $region22: #{lstm_model_forward.1} parent=1 // pred_check
      _
    $region23: #{lstm_model_forward.1} parent=1 // pred_check_branch
      %2007 = sbr.rel (0) target = $region25
    $region24: #{lstm_model_forward.1} parent=1 // pred_region
      _
    $region25: #{lstm_model_forward.1} parent=1 // pred_fallthru
      _
    %2008 = vsyncpa [#allocation3], 1

</llo_original>
